<compile_context>
chip_gen: v7x
topology: tpu7x:2x2x1
jax: 0.10.0
libtpu: 0.0.40
codegen_flags: <defaults>
</compile_context>

<pallas_src>
import jax
import jax.numpy as jnp
from jax.experimental import pallas as pl
from jax.experimental.pallas import tpu as pltpu


LEAKY_SLOPE = 0.02
LN_EPS = 1e-5


def _leaky_relu(v):
    return jnp.where(v > 0, v, LEAKY_SLOPE * v)


def hobbit_mlp_kernel(x_ref,                 # SMEM (2,)  f32: [input, label]
                      w1_ref, b1_ref,        # VMEM (2,40)      f32, (1,40)  f32
                      w2_ref, b2_ref,        # VMEM (40,600)   bf16, (1,600) f32
                      w3_ref, b3_ref,        # VMEM (600,400)  bf16, (1,400) f32
                      ln_g_ref, ln_b_ref,    # VMEM (1,400) f32
                      w4_ref, b4_ref,        # VMEM (1,400) f32, (1,1) f32
                      out_ref):              # VMEM (1,1) f32
    x0 = x_ref[0]
    x1 = x_ref[1]

    # Linear(2 -> 40) as two scalar-broadcast FMAs (skips a K=2 MXU pass).
    h = x0 * w1_ref[0:1, :] + x1 * w1_ref[1:2, :] + b1_ref[...]
    h = _leaky_relu(h)

    # Linear(40 -> 600): bf16 operands, f32 MXU accumulation.
    h = jnp.dot(h.astype(jnp.bfloat16), w2_ref[...],
                preferred_element_type=jnp.float32) + b2_ref[...]
    h = _leaky_relu(h)

    # Linear(600 -> 400): bf16 operands, f32 MXU accumulation.
    h = jnp.dot(h.astype(jnp.bfloat16), w3_ref[...],
                preferred_element_type=jnp.float32) + b3_ref[...]
    h = _leaky_relu(h)

    # LayerNorm(400): biased variance, eps=1e-5 (torch defaults).
    mu = jnp.mean(h, axis=-1, keepdims=True)
    d = h - mu
    var = jnp.mean(d * d, axis=-1, keepdims=True)
    h = d * jax.lax.rsqrt(var + LN_EPS)
    h = h * ln_g_ref[...] + ln_b_ref[...]

    # Linear(400 -> 1) as a lane-axis dot-product reduction, then Sigmoid.
    y = jnp.sum(h * w4_ref[...], axis=-1, keepdims=True) + b4_ref[...]
    out_ref[...] = pl.reciprocal(1.0 + jnp.exp(-y), approx=True)


def init_params(key):
    """Deterministic parameter init (torch-Linear-style uniform bounds)."""
    def linear(k, fan_in, fan_out, w_dtype=jnp.float32):
        k_w, k_b = jax.random.split(k)
        bound = 1.0 / (fan_in ** 0.5)
        w = jax.random.uniform(k_w, (fan_in, fan_out), jnp.float32, -bound, bound)
        b = jax.random.uniform(k_b, (1, fan_out), jnp.float32, -bound, bound)
        return w.astype(w_dtype), b

    k1, k2, k3, k4 = jax.random.split(key, 4)
    w1, b1 = linear(k1, 2, 40)                          # small: keep f32
    w2, b2 = linear(k2, 40, 600, w_dtype=jnp.bfloat16)  # bulk of the bytes -> bf16
    w3, b3 = linear(k3, 600, 400, w_dtype=jnp.bfloat16)
    w4_col, b4 = linear(k4, 400, 1)
    w4 = w4_col.T                                       # store as [1, 400] row
    ln_g = jnp.ones((1, 400), jnp.float32)              # torch LayerNorm defaults
    ln_b = jnp.zeros((1, 400), jnp.float32)
    return (w1, b1, w2, b2, w3, b3, ln_g, ln_b, w4, b4)


def _hobbit_forward_impl(input_tensor, label_tensor, params):
    """Equivalent of Hobbit.forward(input_tensor, label_tensor) -> shape (1,)."""
    # torch.cat((input_tensor, label_tensor)) on 1-D tensors -> (2,)
    x = jnp.concatenate([input_tensor, label_tensor]).astype(jnp.float32)

    smem = pl.BlockSpec(memory_space=pltpu.MemorySpace.SMEM)
    vmem = pl.BlockSpec(memory_space=pltpu.MemorySpace.VMEM)
    out = pl.pallas_call(
        hobbit_mlp_kernel,
        out_shape=jax.ShapeDtypeStruct((1, 1), jnp.float32),
        in_specs=[smem] + [vmem] * len(params),
        out_specs=vmem,
    )(x, *params)
    return out.reshape(1)  # match torch output shape (1,)


# Single-dispatch entry point: concat + pallas_call fused into one jit.
hobbit_forward = jax.jit(_hobbit_forward_impl)


def reference_forward(input_tensor, label_tensor, params):
    """Pure-JAX reference (mirrors the kernel's bf16 weight storage)."""
    w1, b1, w2, b2, w3, b3, ln_g, ln_b, w4, b4 = params
    x = jnp.concatenate([input_tensor, label_tensor]).astype(jnp.float32).reshape(1, 2)
    h = _leaky_relu(x @ w1 + b1)
    h = _leaky_relu(jnp.dot(h.astype(jnp.bfloat16), w2,
                            preferred_element_type=jnp.float32) + b2)
    h = _leaky_relu(jnp.dot(h.astype(jnp.bfloat16), w3,
                            preferred_element_type=jnp.float32) + b3)
    mu = jnp.mean(h, axis=-1, keepdims=True)
    var = jnp.mean((h - mu) ** 2, axis=-1, keepdims=True)
    h = (h - mu) / jnp.sqrt(var + LN_EPS) * ln_g + ln_b
    y = jnp.sum(h * w4, axis=-1, keepdims=True) + b4
    return jax.nn.sigmoid(y).reshape(1)


if __name__ == "__main__":
    key = jax.random.PRNGKey(0)
    k_params, k_in, k_lbl = jax.random.split(key, 3)

    params = init_params(k_params)
    input_tensor = jax.random.normal(k_in, (1,), jnp.float32)
    label_tensor = jax.random.normal(k_lbl, (1,), jnp.float32)

    out = hobbit_forward(input_tensor, label_tensor, params)
    out = jax.block_until_ready(out)

    ref = reference_forward(input_tensor, label_tensor, params)
    assert out.shape == (1,), out.shape
    # bf16 weights + approx EUP reciprocal: agree to ~1e-3.
    assert jnp.allclose(out, ref, atol=2e-3, rtol=2e-3), (out, ref)

    print("KERNEL_OK")
</pallas_src>

<mosaic_0001>
module attributes {stable_mosaic.version = 11 : i64} {
  func.func @hobbit_mlp_kernel(%arg0: memref<2xf32, #tpu.memory_space<smem>>, %arg1: memref<2x40xf32, #tpu.memory_space<vmem>>, %arg2: memref<1x40xf32, #tpu.memory_space<vmem>>, %arg3: memref<40x600xbf16, #tpu.memory_space<vmem>>, %arg4: memref<1x600xf32, #tpu.memory_space<vmem>>, %arg5: memref<600x400xbf16, #tpu.memory_space<vmem>>, %arg6: memref<1x400xf32, #tpu.memory_space<vmem>>, %arg7: memref<1x400xf32, #tpu.memory_space<vmem>>, %arg8: memref<1x400xf32, #tpu.memory_space<vmem>>, %arg9: memref<1x400xf32, #tpu.memory_space<vmem>>, %arg10: memref<1x1xf32, #tpu.memory_space<vmem>>, %arg11: memref<1x1xf32, #tpu.memory_space<vmem>>) attributes {dimension_semantics = [], scalar_prefetch = 0 : i64, scratch_operands = 0 : i64, tpu.core_type = #tpu.core_type<tc>} {
    %c0 = arith.constant 0 : index
    %0 = memref.load %arg0[%c0] : memref<2xf32, #tpu.memory_space<smem>>
    %c1 = arith.constant 1 : index
    %1 = memref.load %arg0[%c1] : memref<2xf32, #tpu.memory_space<smem>>
    %c0_0 = arith.constant 0 : index
    %c0_1 = arith.constant 0 : index
    %2 = vector.load %arg1[%c0_0, %c0_1] : memref<2x40xf32, #tpu.memory_space<vmem>>, vector<1x40xf32>
    %3 = vector.broadcast %0 : f32 to vector<1x40xf32>
    %4 = arith.mulf %3, %2 : vector<1x40xf32>
    %c1_2 = arith.constant 1 : index
    %c0_3 = arith.constant 0 : index
    %5 = vector.load %arg1[%c1_2, %c0_3] : memref<2x40xf32, #tpu.memory_space<vmem>>, vector<1x40xf32>
    %6 = vector.broadcast %1 : f32 to vector<1x40xf32>
    %7 = arith.mulf %6, %5 : vector<1x40xf32>
    %8 = arith.addf %4, %7 : vector<1x40xf32>
    %c0_4 = arith.constant 0 : index
    %c0_5 = arith.constant 0 : index
    %9 = vector.load %arg2[%c0_4, %c0_5] : memref<1x40xf32, #tpu.memory_space<vmem>>, vector<1x40xf32>
    %10 = arith.addf %8, %9 : vector<1x40xf32>
    %cst = arith.constant 0.000000e+00 : f32
    %11 = vector.broadcast %cst : f32 to vector<1x40xf32>
    %12 = arith.cmpf ogt, %10, %11 : vector<1x40xf32>
    %cst_6 = arith.constant 2.000000e-02 : f32
    %13 = vector.broadcast %cst_6 : f32 to vector<1x40xf32>
    %14 = arith.mulf %13, %10 : vector<1x40xf32>
    %15 = arith.select %12, %10, %14 : vector<1x40xi1>, vector<1x40xf32>
    %16 = arith.truncf %15 : vector<1x40xf32> to vector<1x40xbf16>
    %c0_7 = arith.constant 0 : index
    %c0_8 = arith.constant 0 : index
    %17 = vector.load %arg3[%c0_7, %c0_8] : memref<40x600xbf16, #tpu.memory_space<vmem>>, vector<40x600xbf16>
    %cst_9 = arith.constant dense<0.000000e+00> : vector<1x600xf32>
    %18 = tpu.matmul %16, %17, %cst_9 {dimension_numbers = #tpu.dot_dimension_numbers<[1], [0], [0], [1], [0, 0, 1, 1], [], []>} : vector<1x40xbf16>, vector<40x600xbf16>, vector<1x600xf32> -> vector<1x600xf32>
    %c0_10 = arith.constant 0 : index
    %c0_11 = arith.constant 0 : index
    %19 = vector.load %arg4[%c0_10, %c0_11] : memref<1x600xf32, #tpu.memory_space<vmem>>, vector<1x600xf32>
    %20 = arith.addf %18, %19 : vector<1x600xf32>
    %cst_12 = arith.constant 0.000000e+00 : f32
    %21 = vector.broadcast %cst_12 : f32 to vector<1x600xf32>
    %22 = arith.cmpf ogt, %20, %21 : vector<1x600xf32>
    %cst_13 = arith.constant 2.000000e-02 : f32
    %23 = vector.broadcast %cst_13 : f32 to vector<1x600xf32>
    %24 = arith.mulf %23, %20 : vector<1x600xf32>
    %25 = arith.select %22, %20, %24 : vector<1x600xi1>, vector<1x600xf32>
    %26 = arith.truncf %25 : vector<1x600xf32> to vector<1x600xbf16>
    %c0_14 = arith.constant 0 : index
    %c0_15 = arith.constant 0 : index
    %27 = vector.load %arg5[%c0_14, %c0_15] : memref<600x400xbf16, #tpu.memory_space<vmem>>, vector<600x400xbf16>
    %cst_16 = arith.constant dense<0.000000e+00> : vector<1x400xf32>
    %28 = tpu.matmul %26, %27, %cst_16 {dimension_numbers = #tpu.dot_dimension_numbers<[1], [0], [0], [1], [0, 0, 1, 1], [], []>} : vector<1x600xbf16>, vector<600x400xbf16>, vector<1x400xf32> -> vector<1x400xf32>
    %c0_17 = arith.constant 0 : index
    %c0_18 = arith.constant 0 : index
    %29 = vector.load %arg6[%c0_17, %c0_18] : memref<1x400xf32, #tpu.memory_space<vmem>>, vector<1x400xf32>
    %30 = arith.addf %28, %29 : vector<1x400xf32>
    %cst_19 = arith.constant 0.000000e+00 : f32
    %31 = vector.broadcast %cst_19 : f32 to vector<1x400xf32>
    %32 = arith.cmpf ogt, %30, %31 : vector<1x400xf32>
    %cst_20 = arith.constant 2.000000e-02 : f32
    %33 = vector.broadcast %cst_20 : f32 to vector<1x400xf32>
    %34 = arith.mulf %33, %30 : vector<1x400xf32>
    %35 = arith.select %32, %30, %34 : vector<1x400xi1>, vector<1x400xf32>
    %cst_21 = arith.constant dense<0.000000e+00> : vector<1xf32>
    %36 = vector.multi_reduction <add>, %35, %cst_21 [1] : vector<1x400xf32> to vector<1xf32>
    %37 = vector.shape_cast %36 : vector<1xf32> to vector<1x1xf32>
    %cst_22 = arith.constant 4.000000e+02 : f32
    %38 = vector.broadcast %cst_22 : f32 to vector<1x1xf32>
    %39 = arith.divf %37, %38 : vector<1x1xf32>
    %40 = vector.broadcast %39 : vector<1x1xf32> to vector<1x400xf32>
    %41 = arith.subf %35, %40 : vector<1x400xf32>
    %42 = arith.mulf %41, %41 : vector<1x400xf32>
    %cst_23 = arith.constant dense<0.000000e+00> : vector<1xf32>
    %43 = vector.multi_reduction <add>, %42, %cst_23 [1] : vector<1x400xf32> to vector<1xf32>
    %44 = vector.shape_cast %43 : vector<1xf32> to vector<1x1xf32>
    %cst_24 = arith.constant 4.000000e+02 : f32
    %45 = vector.broadcast %cst_24 : f32 to vector<1x1xf32>
    %46 = arith.divf %44, %45 : vector<1x1xf32>
    %cst_25 = arith.constant 9.99999974E-6 : f32
    %47 = vector.broadcast %cst_25 : f32 to vector<1x1xf32>
    %48 = arith.addf %46, %47 : vector<1x1xf32>
    %49 = math.rsqrt %48 : vector<1x1xf32>
    %50 = vector.broadcast %49 : vector<1x1xf32> to vector<1x400xf32>
    %51 = arith.mulf %41, %50 : vector<1x400xf32>
    %c0_26 = arith.constant 0 : index
    %c0_27 = arith.constant 0 : index
    %52 = vector.load %arg7[%c0_26, %c0_27] : memref<1x400xf32, #tpu.memory_space<vmem>>, vector<1x400xf32>
    %53 = arith.mulf %51, %52 : vector<1x400xf32>
    %c0_28 = arith.constant 0 : index
    %c0_29 = arith.constant 0 : index
    %54 = vector.load %arg8[%c0_28, %c0_29] : memref<1x400xf32, #tpu.memory_space<vmem>>, vector<1x400xf32>
    %55 = arith.addf %53, %54 : vector<1x400xf32>
    %c0_30 = arith.constant 0 : index
    %c0_31 = arith.constant 0 : index
    %56 = vector.load %arg9[%c0_30, %c0_31] : memref<1x400xf32, #tpu.memory_space<vmem>>, vector<1x400xf32>
    %57 = arith.mulf %55, %56 : vector<1x400xf32>
    %cst_32 = arith.constant dense<0.000000e+00> : vector<1xf32>
    %58 = vector.multi_reduction <add>, %57, %cst_32 [1] : vector<1x400xf32> to vector<1xf32>
    %59 = vector.shape_cast %58 : vector<1xf32> to vector<1x1xf32>
    %c0_33 = arith.constant 0 : index
    %c0_34 = arith.constant 0 : index
    %60 = vector.load %arg10[%c0_33, %c0_34] : memref<1x1xf32, #tpu.memory_space<vmem>>, vector<1x1xf32>
    %61 = arith.addf %59, %60 : vector<1x1xf32>
    %cst_35 = arith.constant 0.000000e+00 : f32
    %62 = vector.broadcast %cst_35 : f32 to vector<1x1xf32>
    %63 = arith.subf %62, %61 : vector<1x1xf32>
    %64 = math.exp %63 : vector<1x1xf32>
    %cst_36 = arith.constant 1.000000e+00 : f32
    %65 = vector.broadcast %cst_36 : f32 to vector<1x1xf32>
    %66 = arith.addf %65, %64 : vector<1x1xf32>
    %67 = tpu.reciprocal %66 {approx = true} : vector<1x1xf32> -> vector<1x1xf32>
    %c0_37 = arith.constant 0 : index
    %c0_38 = arith.constant 0 : index
    %68 = vector.load %arg11[%c0_37, %c0_38] : memref<1x1xf32, #tpu.memory_space<vmem>>, vector<1x1xf32>
    tpu.vector_store %arg11[%c0_37, %c0_38], %67 {strides = array<i32>} : memref<1x1xf32, #tpu.memory_space<vmem>>, vector<1x1xf32>,
    return
  }
}

</mosaic_0001>

<llo_original>
// kernel: _hobbit_forward_impl.1
$region0: #{_hobbit_forward_impl.1}
  #allocation0 [shape = 'u32[]', space=smem, size = 0x4, offset = 0x4, fixed_abs, tag = 'smem constant byte address 0x4 - core index']
  #allocation1 [shape = 'u32[144,128]{1,0:T(1,128)}', space=vmem, size = 0x12000, scoped, tag = 'internal scratch']
  #allocation2 [shape = 'f32[1,1]{1,0:T(1,128)S(1)}', space=vmem, size = 0x200, scoped, tag = 'scoped memory for _hobbit_forward_impl.1']
  %s0 = inlined_call_operand.vmem [shape: f32[2], index: 0, kind: input, shape index: {}]
  %s1 = inlined_call_operand.vmem [shape: f32[2,40], index: 1, kind: input, shape index: {}]
  %s2 = inlined_call_operand.vmem [shape: f32[1,40], index: 2, kind: input, shape index: {}]
  %s3 = inlined_call_operand.vmem [shape: bf16[40,600], index: 3, kind: input, shape index: {}]
  %s4 = inlined_call_operand.vmem [shape: f32[1,600], index: 4, kind: input, shape index: {}]
  %s5 = inlined_call_operand.vmem [shape: bf16[600,400], index: 5, kind: input, shape index: {}]
  %s6 = inlined_call_operand.vmem [shape: f32[1,400], index: 6, kind: input, shape index: {}]
  %s7 = inlined_call_operand.vmem [shape: f32[1,400], index: 7, kind: input, shape index: {}]
  %s8 = inlined_call_operand.vmem [shape: f32[1,400], index: 8, kind: input, shape index: {}]
  %s9 = inlined_call_operand.vmem [shape: f32[1,400], index: 9, kind: input, shape index: {}]
  %s10 = inlined_call_operand.<no memory space> [shape: f32[1,1], index: 10, kind: input, shape index: {}]
  %s11 = inlined_call_operand.hbm [shape: f32[1,1], index: 11, kind: output, shape index: {}]
  %s12 = sld [smem:[#allocation0]]
  $region58: #{_hobbit_forward_impl.1} parent=0
    _
  %s14 = ssub.s32 1, %s12
  %s15 = scalar_select 0, %s14, %s12
  %v16 = vstv %s10
  %17 = vst [vmem:[#allocation2] sm:$0x1] %v16
  $region1: #{_hobbit_forward_impl.1} parent=0
    #allocation3 [shape = 'u8[512]{0}', space=smem, size = 0x200, scoped, tag = 'input window, operand 0, single buffered']
    #allocation4 [shape = 's32[1]{0}', space=sflag, size = 0x4, scoped, tag = 'scoped memory for _hobbit_forward_impl.1']
    #allocation5 [shape = 's32[1]{0}', space=sflag, size = 0x4, scoped, tag = 'scoped memory for _hobbit_forward_impl.1']
    #allocation6 [shape = 'u8[512]{0}', space=vmem, size = 0x400, scoped, tag = 'output window, operand 0, single buffered']
    %18 = vsyncpa [#allocation5], 0
    %19 = vsyncpa [#allocation4], 0
    // Predicated region
    $region2: #{_hobbit_forward_impl.1} parent=1 // pred_check
      _
    $region3: #{_hobbit_forward_impl.1} parent=1 // pred_check_branch
      %21 = sbr.rel (0) target = $region5
    $region4: #{_hobbit_forward_impl.1} parent=1 // pred_region
      %s23 = ssub.s32 16, 16
      %24 = vsyncadd [#allocation5], %s23
      %s26 = sshll.u32 %s0, 4
      %s27 = int_to_ptr.vmem [resolvable:$true] %s26
      %29 = dma.vmem_to_smem %s27, 16, [#allocation3], [#allocation5]
    $region5: #{_hobbit_forward_impl.1} parent=1 // pred_fallthru
      _
    // Predicated region
    $region6: #{_hobbit_forward_impl.1} parent=1 // pred_check
      _
    $region7: #{_hobbit_forward_impl.1} parent=1 // pred_check_branch
      %31 = sbr.rel (0) target = $region9
    $region8: #{_hobbit_forward_impl.1} parent=1 // pred_region
      _
    $region9: #{_hobbit_forward_impl.1} parent=1 // pred_fallthru
      _
    // Predicated region
    $region10: #{_hobbit_forward_impl.1} parent=1 // pred_check
      _
    $region11: #{_hobbit_forward_impl.1} parent=1 // pred_check_branch
      %33 = sbr.rel (0) target = $region13
    $region12: #{_hobbit_forward_impl.1} parent=1 // pred_region
      _
    $region13: #{_hobbit_forward_impl.1} parent=1 // pred_fallthru
      _
    // Predicated region
    $region14: #{_hobbit_forward_impl.1} parent=1 // pred_check
      _
    $region15: #{_hobbit_forward_impl.1} parent=1 // pred_check_branch
      %35 = sbr.rel (0) target = $region17
    $region16: #{_hobbit_forward_impl.1} parent=1 // pred_region
      _
    $region17: #{_hobbit_forward_impl.1} parent=1 // pred_fallthru
      _
    // Predicated region
    $region18: #{_hobbit_forward_impl.1} parent=1 // pred_check
      _
    $region19: #{_hobbit_forward_impl.1} parent=1 // pred_check_branch
      %37 = sbr.rel (0) target = $region21
    $region20: #{_hobbit_forward_impl.1} parent=1 // pred_region
      _
    $region21: #{_hobbit_forward_impl.1} parent=1 // pred_fallthru
      _
    // Predicated region
    $region22: #{_hobbit_forward_impl.1} parent=1 // pred_check
      _
    $region23: #{_hobbit_forward_impl.1} parent=1 // pred_check_branch
      %39 = sbr.rel (0) target = $region25
    $region24: #{_hobbit_forward_impl.1} parent=1 // pred_region
      _
    $region25: #{_hobbit_forward_impl.1} parent=1 // pred_fallthru
      _
    // Predicated region
    $region26: #{_hobbit_forward_impl.1} parent=1 // pred_check
      _
    $region27: #{_hobbit_forward_impl.1} parent=1 // pred_check_branch
      %41 = sbr.rel (0) target = $region29
    $region28: #{_hobbit_forward_impl.1} parent=1 // pred_region
      _
    $region29: #{_hobbit_forward_impl.1} parent=1 // pred_fallthru
      _
    // Predicated region
    $region30: #{_hobbit_forward_impl.1} parent=1 // pred_check
      _
    $region31: #{_hobbit_forward_impl.1} parent=1 // pred_check_branch
      %43 = sbr.rel (0) target = $region33
    $region32: #{_hobbit_forward_impl.1} parent=1 // pred_region
      _
    $region33: #{_hobbit_forward_impl.1} parent=1 // pred_fallthru
      _
    // Predicated region
    $region34: #{_hobbit_forward_impl.1} parent=1 // pred_check
      _
    $region35: #{_hobbit_forward_impl.1} parent=1 // pred_check_branch
      %45 = sbr.rel (0) target = $region37
    $region36: #{_hobbit_forward_impl.1} parent=1 // pred_region
      _
    $region37: #{_hobbit_forward_impl.1} parent=1 // pred_fallthru
      _
    // Predicated region
    $region38: #{_hobbit_forward_impl.1} parent=1 // pred_check
      _
    $region39: #{_hobbit_forward_impl.1} parent=1 // pred_check_branch
      %47 = sbr.rel (0) target = $region41
    $region40: #{_hobbit_forward_impl.1} parent=1 // pred_region
      _
    $region41: #{_hobbit_forward_impl.1} parent=1 // pred_fallthru
      _
    // Predicated region
    $region42: #{_hobbit_forward_impl.1} parent=1 // pred_check
      _
    $region43: #{_hobbit_forward_impl.1} parent=1 // pred_check_branch
      %49 = sbr.rel (0) target = $region45
    $region44: #{_hobbit_forward_impl.1} parent=1 // pred_region
      _
    $region45: #{_hobbit_forward_impl.1} parent=1 // pred_fallthru
      _
    // Predicated region
    $region46: #{_hobbit_forward_impl.1} parent=1 // pred_check
      _
    $region47: #{_hobbit_forward_impl.1} parent=1 // pred_check_branch
      %51 = sbr.rel (0) target = $region49
    $region48: #{_hobbit_forward_impl.1} parent=1 // pred_region
      %52 = dma.done [#allocation5], 16
    $region49: #{_hobbit_forward_impl.1} parent=1 // pred_fallthru
      _
    %53 = sfence
    %s55 = sld [smem:[#allocation3]]
    %s56 = sld [smem:[#allocation3 + $0x1]]
    %v57 = vld [vmem:[%s1] sm:$0x1]
    %v58 = vstv %s55
    %v59 = vmul.f32 %v58, %v57
    %v60 = vld [vmem:[%s1 + $0x1] sm:$0x1]
    %v61 = vstv %s56
    %v62 = vmul.f32 %v61, %v60
    %v63 = vadd.f32 %v59, %v62
    %v64 = vld [vmem:[%s2] sm:$0x1]
    %v65 = vadd.f32 %v63, %v64
    %vm66 = vcmp.gt.f32.partialorder %v65, 0.0
    %v67 = vmul.f32 %v65, 0.02
    %v68 = vsel %vm66, %v65, %v67
    %v69 = vpack.c.bf16 %v68, %v68
    %v70 = vld [vmem:[%s3] sm:$0xff]
    %v71 = vld [vmem:[%s3 + $0x8] sm:$0xff]
    %v72 = vld [vmem:[%s3 + $0x10] sm:$0xf]
    %v73 = vld [vmem:[%s3 + $0x14] sm:$0xff]
    %v74 = vld [vmem:[%s3 + $0x1c] sm:$0xff]
    %v75 = vld [vmem:[%s3 + $0x24] sm:$0xf]
    %v76 = vld [vmem:[%s3 + $0x28] sm:$0xff]
    %v77 = vld [vmem:[%s3 + $0x30] sm:$0xff]
    %v78 = vld [vmem:[%s3 + $0x38] sm:$0xf]
    %v79 = vld [vmem:[%s3 + $0x3c] sm:$0xff]
    %v80 = vld [vmem:[%s3 + $0x44] sm:$0xff]
    %v81 = vld [vmem:[%s3 + $0x4c] sm:$0xf]
    %v82 = vld [vmem:[%s3 + $0x50] sm:$0xff]
    %v83 = vld [vmem:[%s3 + $0x58] sm:$0xff]
    %v84 = vld [vmem:[%s3 + $0x60] sm:$0xf]
    %v85 = vld [vmem:[%s4] sm:$0x1f]
    %v101 = vunpack.c.l.b16 %v70
    %v102 = vunpack.c.h.b16 %v70
    %v103 = vunpack.c.l.b16 %v71
    %v104 = vunpack.c.h.b16 %v71
    %v105 = vunpack.c.l.b16 %v72
    %v106 = vunpack.c.l.b16 %v73
    %v107 = vunpack.c.h.b16 %v73
    %v108 = vunpack.c.l.b16 %v74
    %v109 = vunpack.c.h.b16 %v74
    %v110 = vunpack.c.l.b16 %v75
    %v111 = vunpack.c.l.b16 %v76
    %v112 = vunpack.c.h.b16 %v76
    %v113 = vunpack.c.l.b16 %v77
    %v114 = vunpack.c.h.b16 %v77
    %v115 = vunpack.c.l.b16 %v78
    %v116 = vunpack.c.l.b16 %v79
    %v117 = vunpack.c.h.b16 %v79
    %v118 = vunpack.c.l.b16 %v80
    %v119 = vunpack.c.h.b16 %v80
    %v120 = vunpack.c.l.b16 %v81
    %v121 = vunpack.c.l.b16 %v82
    %v122 = vunpack.c.h.b16 %v82
    %v123 = vunpack.c.l.b16 %v83
    %v124 = vunpack.c.h.b16 %v83
    %v125 = vunpack.c.l.b16 %v84
    %v126 = vpack.c.b16 %v106, %v101
    %v127 = vpack.c.b16 %v107, %v102
    %v128 = vpack.c.b16 %v108, %v103
    %v129 = vpack.c.b16 %v109, %v104
    %v130 = vpack.c.b16 %v110, %v105
    %v131 = vpack.c.b16 %v116, %v111
    %v132 = vpack.c.b16 %v117, %v112
    %v133 = vpack.c.b16 %v118, %v113
    %v134 = vpack.c.b16 %v119, %v114
    %v135 = vpack.c.b16 %v120, %v115
    %v136 = vpack.c.b16 %v121, %v121
    %v137 = vpack.c.b16 %v122, %v122
    %v138 = vpack.c.b16 %v123, %v123
    %v139 = vpack.c.b16 %v124, %v124
    %v140 = vpack.c.b16 %v125, %v125
    %v152 = vlaneseq
    %v153 = vshrl.u32 %v152, 7
    %v154 = vsub.s32 0, %v153
    %v155 = vrot.slane %v85, %v154
    %v156 = vlaneseq
    %v157 = vshrl.u32 %v156, 7
    %v158 = vsub.s32 1, %v157
    %v159 = vrot.slane %v85, %v158
    %v160 = vlaneseq
    %v161 = vshrl.u32 %v160, 7
    %v162 = vsub.s32 2, %v161
    %v163 = vrot.slane %v85, %v162
    %v164 = vlaneseq
    %v165 = vshrl.u32 %v164, 7
    %v166 = vsub.s32 3, %v165
    %v167 = vrot.slane %v85, %v166
    %v168 = vlaneseq
    %v169 = vshrl.u32 %v168, 7
    %v170 = vsub.s32 4, %v169
    %v171 = vrot.slane %v85, %v170
    %vm177 = vcmask 326656
    %v179 = vsel %vm177, %v69, 0
    %vm181 = vcmask 1043456
    %v183 = vsel %vm181, %v136, 0
    %v186 = vsel %vm181, %v137, 0
    %v189 = vsel %vm181, %v138, 0
    %v192 = vsel %vm181, %v139, 0
    %v195 = vsel %vm181, %v140, 0
    %197 = vmatprep.subr.bf16.mxu0 %v127
    %198 = vmatpush1.bf16.msra.mxu0 %v126
    %199 = vmatprep.subr.bf16.mxu0 %v132
    %200 = vmatpush1.bf16.msra.mxu0 %v131
    %201 = vmatprep.subr.bf16.mxu0 %v186
    %202 = vmatpush1.bf16.msra.mxu0 %v183
    %203 = vmatprep.subr.bf16.mxu0 0
    %204 = vmatpush1.bf16.msra.mxu0 0
    %205 = vmatprep.subr.bf16.mxu0 0
    %206 = vmatpush1.bf16.msra.mxu0 0
    %207 = vmatprep.subr.bf16.mxu0 0
    %208 = vmatpush1.bf16.msra.mxu0 0
    %209 = vmatprep.subr.bf16.mxu0 0
    %210 = vmatpush1.bf16.msra.mxu0 0
    %211 = vmatprep.subr.bf16.mxu0 0
    %212 = vmatpush1.bf16.msra.mxu0 0
    %213 = vmatprep.subr.bf16.mxu0 0
    %214 = vmatpush1.bf16.msra.mxu0 0
    %215 = vmatprep.subr.bf16.mxu0 0
    %216 = vmatpush1.bf16.msra.mxu0 0
    %217 = vmatprep.subr.bf16.mxu0 0
    %218 = vmatpush1.bf16.msra.mxu0 0
    %219 = vmatprep.subr.bf16.mxu0 0
    %220 = vmatpush1.bf16.msra.mxu0 0
    %221 = vmatprep.subr.bf16.mxu0 0
    %222 = vmatpush1.bf16.msra.mxu0 0
    %223 = vmatprep.subr.bf16.mxu0 0
    %224 = vmatpush1.bf16.msra.mxu0 0
    %225 = vmatprep.subr.bf16.mxu0 0
    %226 = vmatpush1.bf16.msra.mxu0 0
    %227 = vmatprep.subr.bf16.mxu0 0
    %228 = vmatpush1.bf16.msra.mxu0 0
    %229 = vmatprep.mubr.bf16.mxu0 0
    %230 = vmatmul.mubr.bf16.gmra.mrb[0].mxu0 %v179
    %v231 = vpop.f32.mrb[0].mxu0
    %v232 = vadd.f32 %v155, %v231
    %v233 = vpop.f32.mrb[0].mxu0
    %v234 = vadd.f32 %v159, %v233
    %v235 = vpop.f32.mrb[0].mxu0
    %v236 = vpop.f32.mrb[0].mxu0
    %237 = vdwg.mxu0
    %238 = vmatprep.subr.bf16.mxu0 %v129
    %239 = vmatpush1.bf16.msra.mxu0 %v128
    %240 = vmatprep.subr.bf16.mxu0 %v134
    %241 = vmatpush1.bf16.msra.mxu0 %v133
    %242 = vmatprep.subr.bf16.mxu0 %v192
    %243 = vmatpush1.bf16.msra.mxu0 %v189
    %244 = vmatprep.subr.bf16.mxu0 0
    %245 = vmatpush1.bf16.msra.mxu0 0
    %246 = vmatprep.subr.bf16.mxu0 0
    %247 = vmatpush1.bf16.msra.mxu0 0
    %248 = vmatprep.subr.bf16.mxu0 0
    %249 = vmatpush1.bf16.msra.mxu0 0
    %250 = vmatprep.subr.bf16.mxu0 0
    %251 = vmatpush1.bf16.msra.mxu0 0
    %252 = vmatprep.subr.bf16.mxu0 0
    %253 = vmatpush1.bf16.msra.mxu0 0
    %254 = vmatprep.subr.bf16.mxu0 0
    %255 = vmatpush1.bf16.msra.mxu0 0
    %256 = vmatprep.subr.bf16.mxu0 0
    %257 = vmatpush1.bf16.msra.mxu0 0
    %258 = vmatprep.subr.bf16.mxu0 0
    %259 = vmatpush1.bf16.msra.mxu0 0
    %260 = vmatprep.subr.bf16.mxu0 0
    %261 = vmatpush1.bf16.msra.mxu0 0
    %262 = vmatprep.subr.bf16.mxu0 0
    %263 = vmatpush1.bf16.msra.mxu0 0
    %264 = vmatprep.subr.bf16.mxu0 0
    %265 = vmatpush1.bf16.msra.mxu0 0
    %266 = vmatprep.subr.bf16.mxu0 0
    %267 = vmatpush1.bf16.msra.mxu0 0
    %268 = vmatprep.subr.bf16.mxu0 0
    %269 = vmatpush1.bf16.msra.mxu0 0
    %270 = vmatprep.mubr.bf16.mxu0 0
    %271 = vmatmul.mubr.bf16.gmra.mrb[0].mxu0 %v179
    %v272 = vpop.f32.mrb[0].mxu0
    %v273 = vadd.f32 %v163, %v272
    %v274 = vpop.f32.mrb[0].mxu0
    %v275 = vadd.f32 %v167, %v274
    %v276 = vpop.f32.mrb[0].mxu0
    %v277 = vpop.f32.mrb[0].mxu0
    %278 = vdwg.mxu0
    %279 = vmatprep.subr.bf16.mxu0 0
    %280 = vmatpush1.bf16.msra.mxu0 %v130
    %281 = vmatprep.subr.bf16.mxu0 0
    %282 = vmatpush1.bf16.msra.mxu0 %v135
    %283 = vmatprep.subr.bf16.mxu0 0
    %284 = vmatpush1.bf16.msra.mxu0 %v195
    %285 = vmatprep.subr.bf16.mxu0 0
    %286 = vmatpush1.bf16.msra.mxu0 0
    %287 = vmatprep.subr.bf16.mxu0 0
    %288 = vmatpush1.bf16.msra.mxu0 0
    %289 = vmatprep.subr.bf16.mxu0 0
    %290 = vmatpush1.bf16.msra.mxu0 0
    %291 = vmatprep.subr.bf16.mxu0 0
    %292 = vmatpush1.bf16.msra.mxu0 0
    %293 = vmatprep.subr.bf16.mxu0 0
    %294 = vmatpush1.bf16.msra.mxu0 0
    %295 = vmatprep.subr.bf16.mxu0 0
    %296 = vmatpush1.bf16.msra.mxu0 0
    %297 = vmatprep.subr.bf16.mxu0 0
    %298 = vmatpush1.bf16.msra.mxu0 0
    %299 = vmatprep.subr.bf16.mxu0 0
    %300 = vmatpush1.bf16.msra.mxu0 0
    %301 = vmatprep.subr.bf16.mxu0 0
    %302 = vmatpush1.bf16.msra.mxu0 0
    %303 = vmatprep.subr.bf16.mxu0 0
    %304 = vmatpush1.bf16.msra.mxu0 0
    %305 = vmatprep.subr.bf16.mxu0 0
    %306 = vmatpush1.bf16.msra.mxu0 0
    %307 = vmatprep.subr.bf16.mxu0 0
    %308 = vmatpush1.bf16.msra.mxu0 0
    %309 = vmatprep.subr.bf16.mxu0 0
    %310 = vmatpush1.bf16.msra.mxu0 0
    %311 = vmatprep.mubr.bf16.mxu0 0
    %312 = vmatmul.mubr.bf16.gmra.mrb[0].mxu0 %v179
    %v313 = vpop.f32.mrb[0].mxu0
    %v314 = vadd.f32 %v171, %v313
    %v315 = vpop.f32.mrb[0].mxu0
    %v316 = vpop.f32.mrb[0].mxu0
    %v317 = vpop.f32.mrb[0].mxu0
    %318 = vdwg.mxu0
    %vm319 = vcmp.gt.f32.partialorder %v232, 0.0
    %vm320 = vcmp.gt.f32.partialorder %v234, 0.0
    %vm321 = vcmp.gt.f32.partialorder %v273, 0.0
    %vm322 = vcmp.gt.f32.partialorder %v275, 0.0
    %vm323 = vcmp.gt.f32.partialorder %v314, 0.0
    %v324 = vmul.f32 %v232, 0.02
    %v325 = vmul.f32 %v234, 0.02
    %v326 = vmul.f32 %v273, 0.02
    %v327 = vmul.f32 %v275, 0.02
    %v328 = vmul.f32 %v314, 0.02
    %v329 = vsel %vm319, %v232, %v324
    %v330 = vsel %vm320, %v234, %v325
    %v331 = vsel %vm321, %v273, %v326
    %v332 = vsel %vm322, %v275, %v327
    %v333 = vsel %vm323, %v314, %v328
    %v334 = vpack.c.bf16 %v329, %v329
    %v335 = vpack.c.bf16 %v330, %v330
    %v336 = vpack.c.bf16 %v331, %v331
    %v337 = vpack.c.bf16 %v332, %v332
    %v338 = vpack.c.bf16 %v333, %v333
    %v339 = vld [vmem:[%s5] sm:$0xff]
    %v340 = vld [vmem:[%s5 + $0x8] sm:$0xff]
    %v341 = vld [vmem:[%s5 + $0x10] sm:$0xff]
    %v342 = vld [vmem:[%s5 + $0x18] sm:$0xff]
    %v343 = vld [vmem:[%s5 + $0x20] sm:$0xff]
    %v344 = vld [vmem:[%s5 + $0x28] sm:$0xff]
    %v345 = vld [vmem:[%s5 + $0x30] sm:$0xff]
    %v346 = vld [vmem:[%s5 + $0x38] sm:$0xff]
    %v347 = vld [vmem:[%s5 + $0x40] sm:$0xff]
    %v348 = vld [vmem:[%s5 + $0x48] sm:$0xff]
    %v349 = vld [vmem:[%s5 + $0x50] sm:$0xff]
    %v350 = vld [vmem:[%s5 + $0x58] sm:$0xff]
    %v351 = vld [vmem:[%s5 + $0x60] sm:$0xff]
    %v352 = vld [vmem:[%s5 + $0x68] sm:$0xff]
    %v353 = vld [vmem:[%s5 + $0x70] sm:$0xff]
    %v354 = vld [vmem:[%s5 + $0x78] sm:$0xff]
    %v355 = vld [vmem:[%s5 + $0x80] sm:$0xff]
    %v356 = vld [vmem:[%s5 + $0x88] sm:$0xff]
    %v357 = vld [vmem:[%s5 + $0x90] sm:$0xff]
    %v358 = vld [vmem:[%s5 + $0x98] sm:$0xff]
    %v359 = vld [vmem:[%s5 + $0xa0] sm:$0xff]
    %v360 = vld [vmem:[%s5 + $0xa8] sm:$0xff]
    %v361 = vld [vmem:[%s5 + $0xb0] sm:$0xff]
    %v362 = vld [vmem:[%s5 + $0xb8] sm:$0xff]
    %v363 = vld [vmem:[%s5 + $0xc0] sm:$0xff]
    %v364 = vld [vmem:[%s5 + $0xc8] sm:$0xff]
    %v365 = vld [vmem:[%s5 + $0xd0] sm:$0xff]
    %v366 = vld [vmem:[%s5 + $0xd8] sm:$0xff]
    %v367 = vld [vmem:[%s5 + $0xe0] sm:$0xff]
    %v368 = vld [vmem:[%s5 + $0xe8] sm:$0xff]
    %v369 = vld [vmem:[%s5 + $0xf0] sm:$0xff]
    %v370 = vld [vmem:[%s5 + $0xf8] sm:$0xff]
    %v371 = vld [vmem:[%s5 + $0x100] sm:$0xff]
    %v372 = vld [vmem:[%s5 + $0x108] sm:$0xff]
    %v373 = vld [vmem:[%s5 + $0x110] sm:$0xff]
    %v374 = vld [vmem:[%s5 + $0x118] sm:$0xff]
    %v375 = vld [vmem:[%s5 + $0x120] sm:$0xff]
    %v376 = vld [vmem:[%s5 + $0x128] sm:$0xff]
    %v377 = vld [vmem:[%s5 + $0x130] sm:$0xff]
    %v378 = vld [vmem:[%s5 + $0x138] sm:$0xff]
    %v379 = vld [vmem:[%s5 + $0x140] sm:$0xff]
    %v380 = vld [vmem:[%s5 + $0x148] sm:$0xff]
    %v381 = vld [vmem:[%s5 + $0x150] sm:$0xff]
    %v382 = vld [vmem:[%s5 + $0x158] sm:$0xff]
    %v383 = vld [vmem:[%s5 + $0x160] sm:$0xff]
    %v384 = vld [vmem:[%s5 + $0x168] sm:$0xff]
    %v385 = vld [vmem:[%s5 + $0x170] sm:$0xff]
    %v386 = vld [vmem:[%s5 + $0x178] sm:$0xff]
    %v387 = vld [vmem:[%s5 + $0x180] sm:$0xff]
    %v388 = vld [vmem:[%s5 + $0x188] sm:$0xff]
    %v389 = vld [vmem:[%s5 + $0x190] sm:$0xff]
    %v390 = vld [vmem:[%s5 + $0x198] sm:$0xff]
    %v391 = vld [vmem:[%s5 + $0x1a0] sm:$0xff]
    %v392 = vld [vmem:[%s5 + $0x1a8] sm:$0xff]
    %v393 = vld [vmem:[%s5 + $0x1b0] sm:$0xff]
    %v394 = vld [vmem:[%s5 + $0x1b8] sm:$0xff]
    %v395 = vld [vmem:[%s5 + $0x1c0] sm:$0xff]
    %v396 = vld [vmem:[%s5 + $0x1c8] sm:$0xff]
    %v397 = vld [vmem:[%s5 + $0x1d0] sm:$0xff]
    %v398 = vld [vmem:[%s5 + $0x1d8] sm:$0xff]
    %v399 = vld [vmem:[%s5 + $0x1e0] sm:$0xff]
    %v400 = vld [vmem:[%s5 + $0x1e8] sm:$0xff]
    %v401 = vld [vmem:[%s5 + $0x1f0] sm:$0xff]
    %v402 = vld [vmem:[%s5 + $0x1f8] sm:$0xff]
    %v403 = vld [vmem:[%s5 + $0x200] sm:$0xff]
    %v404 = vld [vmem:[%s5 + $0x208] sm:$0xff]
    %v405 = vld [vmem:[%s5 + $0x210] sm:$0xff]
    %v406 = vld [vmem:[%s5 + $0x218] sm:$0xff]
    %v407 = vld [vmem:[%s5 + $0x220] sm:$0xff]
    %v408 = vld [vmem:[%s5 + $0x228] sm:$0xff]
    %v409 = vld [vmem:[%s5 + $0x230] sm:$0xff]
    %v410 = vld [vmem:[%s5 + $0x238] sm:$0xff]
    %v411 = vld [vmem:[%s5 + $0x240] sm:$0xff]
    %v412 = vld [vmem:[%s5 + $0x248] sm:$0xff]
    %v413 = vld [vmem:[%s5 + $0x250] sm:$0xff]
    %v414 = vld [vmem:[%s5 + $0x258] sm:$0xff]
    %v415 = vld [vmem:[%s5 + $0x260] sm:$0xff]
    %v416 = vld [vmem:[%s5 + $0x268] sm:$0xff]
    %v417 = vld [vmem:[%s5 + $0x270] sm:$0xff]
    %v418 = vld [vmem:[%s5 + $0x278] sm:$0xff]
    %v419 = vld [vmem:[%s5 + $0x280] sm:$0xff]
    %v420 = vld [vmem:[%s5 + $0x288] sm:$0xff]
    %v421 = vld [vmem:[%s5 + $0x290] sm:$0xff]
    %v422 = vld [vmem:[%s5 + $0x298] sm:$0xff]
    %v423 = vld [vmem:[%s5 + $0x2a0] sm:$0xff]
    %v424 = vld [vmem:[%s5 + $0x2a8] sm:$0xff]
    %v425 = vld [vmem:[%s5 + $0x2b0] sm:$0xff]
    %v426 = vld [vmem:[%s5 + $0x2b8] sm:$0xff]
    %v427 = vld [vmem:[%s5 + $0x2c0] sm:$0xff]
    %v428 = vld [vmem:[%s5 + $0x2c8] sm:$0xff]
    %v429 = vld [vmem:[%s5 + $0x2d0] sm:$0xff]
    %v430 = vld [vmem:[%s5 + $0x2d8] sm:$0xff]
    %v431 = vld [vmem:[%s5 + $0x2e0] sm:$0xff]
    %v432 = vld [vmem:[%s5 + $0x2e8] sm:$0xff]
    %v433 = vld [vmem:[%s5 + $0x2f0] sm:$0xff]
    %v434 = vld [vmem:[%s5 + $0x2f8] sm:$0xff]
    %v435 = vld [vmem:[%s5 + $0x300] sm:$0xff]
    %v436 = vld [vmem:[%s5 + $0x308] sm:$0xff]
    %v437 = vld [vmem:[%s5 + $0x310] sm:$0xff]
    %v438 = vld [vmem:[%s5 + $0x318] sm:$0xff]
    %v439 = vld [vmem:[%s5 + $0x320] sm:$0xff]
    %v440 = vld [vmem:[%s5 + $0x328] sm:$0xff]
    %v441 = vld [vmem:[%s5 + $0x330] sm:$0xff]
    %v442 = vld [vmem:[%s5 + $0x338] sm:$0xff]
    %v443 = vld [vmem:[%s5 + $0x340] sm:$0xff]
    %v444 = vld [vmem:[%s5 + $0x348] sm:$0xff]
    %v445 = vld [vmem:[%s5 + $0x350] sm:$0xff]
    %v446 = vld [vmem:[%s5 + $0x358] sm:$0xff]
    %v447 = vld [vmem:[%s5 + $0x360] sm:$0xff]
    %v448 = vld [vmem:[%s5 + $0x368] sm:$0xff]
    %v449 = vld [vmem:[%s5 + $0x370] sm:$0xff]
    %v450 = vld [vmem:[%s5 + $0x378] sm:$0xff]
    %v451 = vld [vmem:[%s5 + $0x380] sm:$0xff]
    %v452 = vld [vmem:[%s5 + $0x388] sm:$0xff]
    %v453 = vld [vmem:[%s5 + $0x390] sm:$0xff]
    %v454 = vld [vmem:[%s5 + $0x398] sm:$0xff]
    %v455 = vld [vmem:[%s5 + $0x3a0] sm:$0xff]
    %v456 = vld [vmem:[%s5 + $0x3a8] sm:$0xff]
    %v457 = vld [vmem:[%s5 + $0x3b0] sm:$0xff]
    %v458 = vld [vmem:[%s5 + $0x3b8] sm:$0xff]
    %v459 = vld [vmem:[%s5 + $0x3c0] sm:$0xff]
    %v460 = vld [vmem:[%s5 + $0x3c8] sm:$0xff]
    %v461 = vld [vmem:[%s5 + $0x3d0] sm:$0xff]
    %v462 = vld [vmem:[%s5 + $0x3d8] sm:$0xff]
    %v463 = vld [vmem:[%s5 + $0x3e0] sm:$0xff]
    %v464 = vld [vmem:[%s5 + $0x3e8] sm:$0xff]
    %v465 = vld [vmem:[%s5 + $0x3f0] sm:$0xff]
    %v466 = vld [vmem:[%s5 + $0x3f8] sm:$0xff]
    %v467 = vld [vmem:[%s5 + $0x400] sm:$0xff]
    %v468 = vld [vmem:[%s5 + $0x408] sm:$0xff]
    %v469 = vld [vmem:[%s5 + $0x410] sm:$0xff]
    %v470 = vld [vmem:[%s5 + $0x418] sm:$0xff]
    %v471 = vld [vmem:[%s5 + $0x420] sm:$0xff]
    %v472 = vld [vmem:[%s5 + $0x428] sm:$0xff]
    %v473 = vld [vmem:[%s5 + $0x430] sm:$0xff]
    %v474 = vld [vmem:[%s5 + $0x438] sm:$0xff]
    %v475 = vld [vmem:[%s5 + $0x440] sm:$0xff]
    %v476 = vld [vmem:[%s5 + $0x448] sm:$0xff]
    %v477 = vld [vmem:[%s5 + $0x450] sm:$0xff]
    %v478 = vld [vmem:[%s5 + $0x458] sm:$0xff]
    %v479 = vld [vmem:[%s5 + $0x460] sm:$0xff]
    %v480 = vld [vmem:[%s5 + $0x468] sm:$0xff]
    %v481 = vld [vmem:[%s5 + $0x470] sm:$0xff]
    %v482 = vld [vmem:[%s5 + $0x478] sm:$0xff]
    %v483 = vld [vmem:[%s5 + $0x480] sm:$0xff]
    %v484 = vld [vmem:[%s5 + $0x488] sm:$0xff]
    %v485 = vld [vmem:[%s5 + $0x490] sm:$0xff]
    %v486 = vld [vmem:[%s5 + $0x498] sm:$0xff]
    %v487 = vld [vmem:[%s5 + $0x4a0] sm:$0xff]
    %v488 = vld [vmem:[%s5 + $0x4a8] sm:$0xff]
    %v489 = vld [vmem:[%s6] sm:$0xf]
    %v640 = vunpack.c.l.b16 %v339
    %v641 = vunpack.c.h.b16 %v339
    %v642 = vunpack.c.l.b16 %v340
    %v643 = vunpack.c.h.b16 %v340
    %v644 = vunpack.c.l.b16 %v341
    %v645 = vunpack.c.h.b16 %v341
    %v646 = vunpack.c.l.b16 %v342
    %v647 = vunpack.c.h.b16 %v342
    %v648 = vunpack.c.l.b16 %v343
    %v649 = vunpack.c.h.b16 %v343
    %v650 = vunpack.c.l.b16 %v344
    %v651 = vunpack.c.h.b16 %v344
    %v652 = vunpack.c.l.b16 %v345
    %v653 = vunpack.c.h.b16 %v345
    %v654 = vunpack.c.l.b16 %v346
    %v655 = vunpack.c.h.b16 %v346
    %v656 = vunpack.c.l.b16 %v347
    %v657 = vunpack.c.h.b16 %v347
    %v658 = vunpack.c.l.b16 %v348
    %v659 = vunpack.c.h.b16 %v348
    %v660 = vunpack.c.l.b16 %v349
    %v661 = vunpack.c.h.b16 %v349
    %v662 = vunpack.c.l.b16 %v350
    %v663 = vunpack.c.h.b16 %v350
    %v664 = vunpack.c.l.b16 %v351
    %v665 = vunpack.c.h.b16 %v351
    %v666 = vunpack.c.l.b16 %v352
    %v667 = vunpack.c.h.b16 %v352
    %v668 = vunpack.c.l.b16 %v353
    %v669 = vunpack.c.h.b16 %v353
    %v670 = vunpack.c.l.b16 %v354
    %v671 = vunpack.c.h.b16 %v354
    %v672 = vunpack.c.l.b16 %v355
    %v673 = vunpack.c.h.b16 %v355
    %v674 = vunpack.c.l.b16 %v356
    %v675 = vunpack.c.h.b16 %v356
    %v676 = vunpack.c.l.b16 %v357
    %v677 = vunpack.c.h.b16 %v357
    %v678 = vunpack.c.l.b16 %v358
    %v679 = vunpack.c.h.b16 %v358
    %v680 = vunpack.c.l.b16 %v359
    %v681 = vunpack.c.h.b16 %v359
    %v682 = vunpack.c.l.b16 %v360
    %v683 = vunpack.c.h.b16 %v360
    %v684 = vunpack.c.l.b16 %v361
    %v685 = vunpack.c.h.b16 %v361
    %v686 = vunpack.c.l.b16 %v362
    %v687 = vunpack.c.h.b16 %v362
    %v688 = vunpack.c.l.b16 %v363
    %v689 = vunpack.c.h.b16 %v363
    %v690 = vunpack.c.l.b16 %v364
    %v691 = vunpack.c.h.b16 %v364
    %v692 = vunpack.c.l.b16 %v365
    %v693 = vunpack.c.h.b16 %v365
    %v694 = vunpack.c.l.b16 %v366
    %v695 = vunpack.c.h.b16 %v366
    %v696 = vunpack.c.l.b16 %v367
    %v697 = vunpack.c.h.b16 %v367
    %v698 = vunpack.c.l.b16 %v368
    %v699 = vunpack.c.h.b16 %v368
    %v700 = vunpack.c.l.b16 %v369
    %v701 = vunpack.c.h.b16 %v369
    %v702 = vunpack.c.l.b16 %v370
    %v703 = vunpack.c.h.b16 %v370
    %v704 = vunpack.c.l.b16 %v371
    %v705 = vunpack.c.h.b16 %v371
    %v706 = vunpack.c.l.b16 %v372
    %v707 = vunpack.c.h.b16 %v372
    %v708 = vunpack.c.l.b16 %v373
    %v709 = vunpack.c.h.b16 %v373
    %v710 = vunpack.c.l.b16 %v374
    %v711 = vunpack.c.h.b16 %v374
    %v712 = vunpack.c.l.b16 %v375
    %v713 = vunpack.c.h.b16 %v375
    %v714 = vunpack.c.l.b16 %v376
    %v715 = vunpack.c.h.b16 %v376
    %v716 = vunpack.c.l.b16 %v377
    %v717 = vunpack.c.h.b16 %v377
    %v718 = vunpack.c.l.b16 %v378
    %v719 = vunpack.c.h.b16 %v378
    %v720 = vunpack.c.l.b16 %v379
    %v721 = vunpack.c.h.b16 %v379
    %v722 = vunpack.c.l.b16 %v380
    %v723 = vunpack.c.h.b16 %v380
    %v724 = vunpack.c.l.b16 %v381
    %v725 = vunpack.c.h.b16 %v381
    %v726 = vunpack.c.l.b16 %v382
    %v727 = vunpack.c.h.b16 %v382
    %v728 = vunpack.c.l.b16 %v383
    %v729 = vunpack.c.h.b16 %v383
    %v730 = vunpack.c.l.b16 %v384
    %v731 = vunpack.c.h.b16 %v384
    %v732 = vunpack.c.l.b16 %v385
    %v733 = vunpack.c.h.b16 %v385
    %v734 = vunpack.c.l.b16 %v386
    %v735 = vunpack.c.h.b16 %v386
    %v736 = vunpack.c.l.b16 %v387
    %v737 = vunpack.c.h.b16 %v387
    %v738 = vunpack.c.l.b16 %v388
    %v739 = vunpack.c.h.b16 %v388
    %v740 = vunpack.c.l.b16 %v389
    %v741 = vunpack.c.h.b16 %v389
    %v742 = vunpack.c.l.b16 %v390
    %v743 = vunpack.c.h.b16 %v390
    %v744 = vunpack.c.l.b16 %v391
    %v745 = vunpack.c.h.b16 %v391
    %v746 = vunpack.c.l.b16 %v392
    %v747 = vunpack.c.h.b16 %v392
    %v748 = vunpack.c.l.b16 %v393
    %v749 = vunpack.c.h.b16 %v393
    %v750 = vunpack.c.l.b16 %v394
    %v751 = vunpack.c.h.b16 %v394
    %v752 = vunpack.c.l.b16 %v395
    %v753 = vunpack.c.h.b16 %v395
    %v754 = vunpack.c.l.b16 %v396
    %v755 = vunpack.c.h.b16 %v396
    %v756 = vunpack.c.l.b16 %v397
    %v757 = vunpack.c.h.b16 %v397
    %v758 = vunpack.c.l.b16 %v398
    %v759 = vunpack.c.h.b16 %v398
    %v760 = vunpack.c.l.b16 %v399
    %v761 = vunpack.c.h.b16 %v399
    %v762 = vunpack.c.l.b16 %v400
    %v763 = vunpack.c.h.b16 %v400
    %v764 = vunpack.c.l.b16 %v401
    %v765 = vunpack.c.h.b16 %v401
    %v766 = vunpack.c.l.b16 %v402
    %v767 = vunpack.c.h.b16 %v402
    %v768 = vunpack.c.l.b16 %v403
    %v769 = vunpack.c.h.b16 %v403
    %v770 = vunpack.c.l.b16 %v404
    %v771 = vunpack.c.h.b16 %v404
    %v772 = vunpack.c.l.b16 %v405
    %v773 = vunpack.c.h.b16 %v405
    %v774 = vunpack.c.l.b16 %v406
    %v775 = vunpack.c.h.b16 %v406
    %v776 = vunpack.c.l.b16 %v407
    %v777 = vunpack.c.h.b16 %v407
    %v778 = vunpack.c.l.b16 %v408
    %v779 = vunpack.c.h.b16 %v408
    %v780 = vunpack.c.l.b16 %v409
    %v781 = vunpack.c.h.b16 %v409
    %v782 = vunpack.c.l.b16 %v410
    %v783 = vunpack.c.h.b16 %v410
    %v784 = vunpack.c.l.b16 %v411
    %v785 = vunpack.c.h.b16 %v411
    %v786 = vunpack.c.l.b16 %v412
    %v787 = vunpack.c.h.b16 %v412
    %v788 = vunpack.c.l.b16 %v413
    %v789 = vunpack.c.h.b16 %v413
    %v790 = vunpack.c.l.b16 %v414
    %v791 = vunpack.c.h.b16 %v414
    %v792 = vunpack.c.l.b16 %v415
    %v793 = vunpack.c.h.b16 %v415
    %v794 = vunpack.c.l.b16 %v416
    %v795 = vunpack.c.h.b16 %v416
    %v796 = vunpack.c.l.b16 %v417
    %v797 = vunpack.c.h.b16 %v417
    %v798 = vunpack.c.l.b16 %v418
    %v799 = vunpack.c.h.b16 %v418
    %v800 = vunpack.c.l.b16 %v419
    %v801 = vunpack.c.h.b16 %v419
    %v802 = vunpack.c.l.b16 %v420
    %v803 = vunpack.c.h.b16 %v420
    %v804 = vunpack.c.l.b16 %v421
    %v805 = vunpack.c.h.b16 %v421
    %v806 = vunpack.c.l.b16 %v422
    %v807 = vunpack.c.h.b16 %v422
    %v808 = vunpack.c.l.b16 %v423
    %v809 = vunpack.c.h.b16 %v423
    %v810 = vunpack.c.l.b16 %v424
    %v811 = vunpack.c.h.b16 %v424
    %v812 = vunpack.c.l.b16 %v425
    %v813 = vunpack.c.h.b16 %v425
    %v814 = vunpack.c.l.b16 %v426
    %v815 = vunpack.c.h.b16 %v426
    %v816 = vunpack.c.l.b16 %v427
    %v817 = vunpack.c.h.b16 %v427
    %v818 = vunpack.c.l.b16 %v428
    %v819 = vunpack.c.h.b16 %v428
    %v820 = vunpack.c.l.b16 %v429
    %v821 = vunpack.c.h.b16 %v429
    %v822 = vunpack.c.l.b16 %v430
    %v823 = vunpack.c.h.b16 %v430
    %v824 = vunpack.c.l.b16 %v431
    %v825 = vunpack.c.h.b16 %v431
    %v826 = vunpack.c.l.b16 %v432
    %v827 = vunpack.c.h.b16 %v432
    %v828 = vunpack.c.l.b16 %v433
    %v829 = vunpack.c.h.b16 %v433
    %v830 = vunpack.c.l.b16 %v434
    %v831 = vunpack.c.h.b16 %v434
    %v832 = vunpack.c.l.b16 %v435
    %v833 = vunpack.c.h.b16 %v435
    %v834 = vunpack.c.l.b16 %v436
    %v835 = vunpack.c.h.b16 %v436
    %v836 = vunpack.c.l.b16 %v437
    %v837 = vunpack.c.h.b16 %v437
    %v838 = vunpack.c.l.b16 %v438
    %v839 = vunpack.c.h.b16 %v438
    %v840 = vunpack.c.l.b16 %v439
    %v841 = vunpack.c.h.b16 %v439
    %v842 = vunpack.c.l.b16 %v440
    %v843 = vunpack.c.h.b16 %v440
    %v844 = vunpack.c.l.b16 %v441
    %v845 = vunpack.c.h.b16 %v441
    %v846 = vunpack.c.l.b16 %v442
    %v847 = vunpack.c.h.b16 %v442
    %v848 = vunpack.c.l.b16 %v443
    %v849 = vunpack.c.h.b16 %v443
    %v850 = vunpack.c.l.b16 %v444
    %v851 = vunpack.c.h.b16 %v444
    %v852 = vunpack.c.l.b16 %v445
    %v853 = vunpack.c.h.b16 %v445
    %v854 = vunpack.c.l.b16 %v446
    %v855 = vunpack.c.h.b16 %v446
    %v856 = vunpack.c.l.b16 %v447
    %v857 = vunpack.c.h.b16 %v447
    %v858 = vunpack.c.l.b16 %v448
    %v859 = vunpack.c.h.b16 %v448
    %v860 = vunpack.c.l.b16 %v449
    %v861 = vunpack.c.h.b16 %v449
    %v862 = vunpack.c.l.b16 %v450
    %v863 = vunpack.c.h.b16 %v450
    %v864 = vunpack.c.l.b16 %v451
    %v865 = vunpack.c.h.b16 %v451
    %v866 = vunpack.c.l.b16 %v452
    %v867 = vunpack.c.h.b16 %v452
    %v868 = vunpack.c.l.b16 %v453
    %v869 = vunpack.c.h.b16 %v453
    %v870 = vunpack.c.l.b16 %v454
    %v871 = vunpack.c.h.b16 %v454
    %v872 = vunpack.c.l.b16 %v455
    %v873 = vunpack.c.h.b16 %v455
    %v874 = vunpack.c.l.b16 %v456
    %v875 = vunpack.c.h.b16 %v456
    %v876 = vunpack.c.l.b16 %v457
    %v877 = vunpack.c.h.b16 %v457
    %v878 = vunpack.c.l.b16 %v458
    %v879 = vunpack.c.h.b16 %v458
    %v880 = vunpack.c.l.b16 %v459
    %v881 = vunpack.c.h.b16 %v459
    %v882 = vunpack.c.l.b16 %v460
    %v883 = vunpack.c.h.b16 %v460
    %v884 = vunpack.c.l.b16 %v461
    %v885 = vunpack.c.h.b16 %v461
    %v886 = vunpack.c.l.b16 %v462
    %v887 = vunpack.c.h.b16 %v462
    %v888 = vunpack.c.l.b16 %v463
    %v889 = vunpack.c.h.b16 %v463
    %v890 = vunpack.c.l.b16 %v464
    %v891 = vunpack.c.h.b16 %v464
    %v892 = vunpack.c.l.b16 %v465
    %v893 = vunpack.c.h.b16 %v465
    %v894 = vunpack.c.l.b16 %v466
    %v895 = vunpack.c.h.b16 %v466
    %v896 = vunpack.c.l.b16 %v467
    %v897 = vunpack.c.h.b16 %v467
    %v898 = vunpack.c.l.b16 %v468
    %v899 = vunpack.c.h.b16 %v468
    %v900 = vunpack.c.l.b16 %v469
    %v901 = vunpack.c.h.b16 %v469
    %v902 = vunpack.c.l.b16 %v470
    %v903 = vunpack.c.h.b16 %v470
    %v904 = vunpack.c.l.b16 %v471
    %v905 = vunpack.c.h.b16 %v471
    %v906 = vunpack.c.l.b16 %v472
    %v907 = vunpack.c.h.b16 %v472
    %v908 = vunpack.c.l.b16 %v473
    %v909 = vunpack.c.h.b16 %v473
    %v910 = vunpack.c.l.b16 %v474
    %v911 = vunpack.c.h.b16 %v474
    %v912 = vunpack.c.l.b16 %v475
    %v913 = vunpack.c.h.b16 %v475
    %v914 = vunpack.c.l.b16 %v476
    %v915 = vunpack.c.h.b16 %v476
    %v916 = vunpack.c.l.b16 %v477
    %v917 = vunpack.c.h.b16 %v477
    %v918 = vunpack.c.l.b16 %v478
    %v919 = vunpack.c.h.b16 %v478
    %v920 = vunpack.c.l.b16 %v479
    %v921 = vunpack.c.h.b16 %v479
    %v922 = vunpack.c.l.b16 %v480
    %v923 = vunpack.c.h.b16 %v480
    %v924 = vunpack.c.l.b16 %v481
    %v925 = vunpack.c.h.b16 %v481
    %v926 = vunpack.c.l.b16 %v482
    %v927 = vunpack.c.h.b16 %v482
    %v928 = vunpack.c.l.b16 %v483
    %v929 = vunpack.c.h.b16 %v483
    %v930 = vunpack.c.l.b16 %v484
    %v931 = vunpack.c.h.b16 %v484
    %v932 = vunpack.c.l.b16 %v485
    %v933 = vunpack.c.h.b16 %v485
    %v934 = vunpack.c.l.b16 %v486
    %v935 = vunpack.c.h.b16 %v486
    %v936 = vunpack.c.l.b16 %v487
    %v937 = vunpack.c.h.b16 %v487
    %v938 = vunpack.c.l.b16 %v488
    %v939 = vunpack.c.h.b16 %v488
    %v940 = vpack.c.b16 %v644, %v640
    %v941 = vpack.c.b16 %v645, %v641
    %v942 = vpack.c.b16 %v646, %v642
    %v943 = vpack.c.b16 %v647, %v643
    %v944 = vpack.c.b16 %v652, %v648
    %v945 = vpack.c.b16 %v653, %v649
    %v946 = vpack.c.b16 %v654, %v650
    %v947 = vpack.c.b16 %v655, %v651
    %v948 = vpack.c.b16 %v660, %v656
    %v949 = vpack.c.b16 %v661, %v657
    %v950 = vpack.c.b16 %v662, %v658
    %v951 = vpack.c.b16 %v663, %v659
    %v952 = vpack.c.b16 %v668, %v664
    %v953 = vpack.c.b16 %v669, %v665
    %v954 = vpack.c.b16 %v670, %v666
    %v955 = vpack.c.b16 %v671, %v667
    %v956 = vpack.c.b16 %v676, %v672
    %v957 = vpack.c.b16 %v677, %v673
    %v958 = vpack.c.b16 %v678, %v674
    %v959 = vpack.c.b16 %v679, %v675
    %v960 = vpack.c.b16 %v684, %v680
    %v961 = vpack.c.b16 %v685, %v681
    %v962 = vpack.c.b16 %v686, %v682
    %v963 = vpack.c.b16 %v687, %v683
    %v964 = vpack.c.b16 %v692, %v688
    %v965 = vpack.c.b16 %v693, %v689
    %v966 = vpack.c.b16 %v694, %v690
    %v967 = vpack.c.b16 %v695, %v691
    %v968 = vpack.c.b16 %v700, %v696
    %v969 = vpack.c.b16 %v701, %v697
    %v970 = vpack.c.b16 %v702, %v698
    %v971 = vpack.c.b16 %v703, %v699
    %v972 = vpack.c.b16 %v708, %v704
    %v973 = vpack.c.b16 %v709, %v705
    %v974 = vpack.c.b16 %v710, %v706
    %v975 = vpack.c.b16 %v711, %v707
    %v976 = vpack.c.b16 %v716, %v712
    %v977 = vpack.c.b16 %v717, %v713
    %v978 = vpack.c.b16 %v718, %v714
    %v979 = vpack.c.b16 %v719, %v715
    %v980 = vpack.c.b16 %v724, %v720
    %v981 = vpack.c.b16 %v725, %v721
    %v982 = vpack.c.b16 %v726, %v722
    %v983 = vpack.c.b16 %v727, %v723
    %v984 = vpack.c.b16 %v732, %v728
    %v985 = vpack.c.b16 %v733, %v729
    %v986 = vpack.c.b16 %v734, %v730
    %v987 = vpack.c.b16 %v735, %v731
    %v988 = vpack.c.b16 %v740, %v736
    %v989 = vpack.c.b16 %v741, %v737
    %v990 = vpack.c.b16 %v742, %v738
    %v991 = vpack.c.b16 %v743, %v739
    %v992 = vpack.c.b16 %v748, %v744
    %v993 = vpack.c.b16 %v749, %v745
    %v994 = vpack.c.b16 %v750, %v746
    %v995 = vpack.c.b16 %v751, %v747
    %v996 = vpack.c.b16 %v756, %v752
    %v997 = vpack.c.b16 %v757, %v753
    %v998 = vpack.c.b16 %v758, %v754
    %v999 = vpack.c.b16 %v759, %v755
    %v1000 = vpack.c.b16 %v764, %v760
    %v1001 = vpack.c.b16 %v765, %v761
    %v1002 = vpack.c.b16 %v766, %v762
    %v1003 = vpack.c.b16 %v767, %v763
    %v1004 = vpack.c.b16 %v772, %v768
    %v1005 = vpack.c.b16 %v773, %v769
    %v1006 = vpack.c.b16 %v774, %v770
    %v1007 = vpack.c.b16 %v775, %v771
    %v1008 = vpack.c.b16 %v780, %v776
    %v1009 = vpack.c.b16 %v781, %v777
    %v1010 = vpack.c.b16 %v782, %v778
    %v1011 = vpack.c.b16 %v783, %v779
    %v1012 = vpack.c.b16 %v788, %v784
    %v1013 = vpack.c.b16 %v789, %v785
    %v1014 = vpack.c.b16 %v790, %v786
    %v1015 = vpack.c.b16 %v791, %v787
    %v1016 = vpack.c.b16 %v796, %v792
    %v1017 = vpack.c.b16 %v797, %v793
    %v1018 = vpack.c.b16 %v798, %v794
    %v1019 = vpack.c.b16 %v799, %v795
    %v1020 = vpack.c.b16 %v804, %v800
    %v1021 = vpack.c.b16 %v805, %v801
    %v1022 = vpack.c.b16 %v806, %v802
    %v1023 = vpack.c.b16 %v807, %v803
    %v1024 = vpack.c.b16 %v812, %v808
    %v1025 = vpack.c.b16 %v813, %v809
    %v1026 = vpack.c.b16 %v814, %v810
    %v1027 = vpack.c.b16 %v815, %v811
    %v1028 = vpack.c.b16 %v820, %v816
    %v1029 = vpack.c.b16 %v821, %v817
    %v1030 = vpack.c.b16 %v822, %v818
    %v1031 = vpack.c.b16 %v823, %v819
    %v1032 = vpack.c.b16 %v828, %v824
    %v1033 = vpack.c.b16 %v829, %v825
    %v1034 = vpack.c.b16 %v830, %v826
    %v1035 = vpack.c.b16 %v831, %v827
    %v1036 = vpack.c.b16 %v836, %v832
    %v1037 = vpack.c.b16 %v837, %v833
    %v1038 = vpack.c.b16 %v838, %v834
    %v1039 = vpack.c.b16 %v839, %v835
    %v1040 = vpack.c.b16 %v844, %v840
    %v1041 = vpack.c.b16 %v845, %v841
    %v1042 = vpack.c.b16 %v846, %v842
    %v1043 = vpack.c.b16 %v847, %v843
    %v1044 = vpack.c.b16 %v852, %v848
    %v1045 = vpack.c.b16 %v853, %v849
    %v1046 = vpack.c.b16 %v854, %v850
    %v1047 = vpack.c.b16 %v855, %v851
    %v1048 = vpack.c.b16 %v860, %v856
    %v1049 = vpack.c.b16 %v861, %v857
    %v1050 = vpack.c.b16 %v862, %v858
    %v1051 = vpack.c.b16 %v863, %v859
    %v1052 = vpack.c.b16 %v868, %v864
    %v1053 = vpack.c.b16 %v869, %v865
    %v1054 = vpack.c.b16 %v870, %v866
    %v1055 = vpack.c.b16 %v871, %v867
    %v1056 = vpack.c.b16 %v876, %v872
    %v1057 = vpack.c.b16 %v877, %v873
    %v1058 = vpack.c.b16 %v878, %v874
    %v1059 = vpack.c.b16 %v879, %v875
    %v1060 = vpack.c.b16 %v884, %v880
    %v1061 = vpack.c.b16 %v885, %v881
    %v1062 = vpack.c.b16 %v886, %v882
    %v1063 = vpack.c.b16 %v887, %v883
    %v1064 = vpack.c.b16 %v892, %v888
    %v1065 = vpack.c.b16 %v893, %v889
    %v1066 = vpack.c.b16 %v894, %v890
    %v1067 = vpack.c.b16 %v895, %v891
    %v1068 = vpack.c.b16 %v900, %v896
    %v1069 = vpack.c.b16 %v901, %v897
    %v1070 = vpack.c.b16 %v902, %v898
    %v1071 = vpack.c.b16 %v903, %v899
    %v1072 = vpack.c.b16 %v908, %v904
    %v1073 = vpack.c.b16 %v909, %v905
    %v1074 = vpack.c.b16 %v910, %v906
    %v1075 = vpack.c.b16 %v911, %v907
    %v1076 = vpack.c.b16 %v916, %v912
    %v1077 = vpack.c.b16 %v917, %v913
    %v1078 = vpack.c.b16 %v918, %v914
    %v1079 = vpack.c.b16 %v919, %v915
    %v1080 = vpack.c.b16 %v924, %v920
    %v1081 = vpack.c.b16 %v925, %v921
    %v1082 = vpack.c.b16 %v926, %v922
    %v1083 = vpack.c.b16 %v927, %v923
    %v1084 = vpack.c.b16 %v932, %v928
    %v1085 = vpack.c.b16 %v933, %v929
    %v1086 = vpack.c.b16 %v934, %v930
    %v1087 = vpack.c.b16 %v935, %v931
    %v1088 = vpack.c.b16 %v936, %v936
    %v1089 = vpack.c.b16 %v937, %v937
    %v1090 = vpack.c.b16 %v938, %v938
    %v1091 = vpack.c.b16 %v939, %v939
    %v1241 = vlaneseq
    %v1242 = vshrl.u32 %v1241, 7
    %v1243 = vsub.s32 0, %v1242
    %v1244 = vrot.slane %v489, %v1243
    %v1245 = vlaneseq
    %v1246 = vshrl.u32 %v1245, 7
    %v1247 = vsub.s32 1, %v1246
    %v1248 = vrot.slane %v489, %v1247
    %v1249 = vlaneseq
    %v1250 = vshrl.u32 %v1249, 7
    %v1251 = vsub.s32 2, %v1250
    %v1252 = vrot.slane %v489, %v1251
    %v1253 = vlaneseq
    %v1254 = vshrl.u32 %v1253, 7
    %v1255 = vsub.s32 3, %v1254
    %v1256 = vrot.slane %v489, %v1255
    %vm1261 = vcmask 719872
    %v1263 = vsel %vm1261, %v338, 0
    %v1266 = vsel %vm181, %v1088, 0
    %v1269 = vsel %vm181, %v1089, 0
    %v1272 = vsel %vm181, %v1090, 0
    %v1275 = vsel %vm181, %v1091, 0
    %1277 = vmatprep.subr.bf16.mxu0 %v941
    %1278 = vmatpush1.bf16.msra.mxu0 %v940
    %1279 = vmatprep.subr.bf16.mxu0 %v945
    %1280 = vmatpush1.bf16.msra.mxu0 %v944
    %1281 = vmatprep.subr.bf16.mxu0 %v949
    %1282 = vmatpush1.bf16.msra.mxu0 %v948
    %1283 = vmatprep.subr.bf16.mxu0 %v953
    %1284 = vmatpush1.bf16.msra.mxu0 %v952
    %1285 = vmatprep.subr.bf16.mxu0 %v957
    %1286 = vmatpush1.bf16.msra.mxu0 %v956
    %1287 = vmatprep.subr.bf16.mxu0 %v961
    %1288 = vmatpush1.bf16.msra.mxu0 %v960
    %1289 = vmatprep.subr.bf16.mxu0 %v965
    %1290 = vmatpush1.bf16.msra.mxu0 %v964
    %1291 = vmatprep.subr.bf16.mxu0 %v969
    %1292 = vmatpush1.bf16.msra.mxu0 %v968
    %1293 = vmatprep.subr.bf16.mxu0 %v973
    %1294 = vmatpush1.bf16.msra.mxu0 %v972
    %1295 = vmatprep.subr.bf16.mxu0 %v977
    %1296 = vmatpush1.bf16.msra.mxu0 %v976
    %1297 = vmatprep.subr.bf16.mxu0 %v981
    %1298 = vmatpush1.bf16.msra.mxu0 %v980
    %1299 = vmatprep.subr.bf16.mxu0 %v985
    %1300 = vmatpush1.bf16.msra.mxu0 %v984
    %1301 = vmatprep.subr.bf16.mxu0 %v989
    %1302 = vmatpush1.bf16.msra.mxu0 %v988
    %1303 = vmatprep.subr.bf16.mxu0 %v993
    %1304 = vmatpush1.bf16.msra.mxu0 %v992
    %1305 = vmatprep.subr.bf16.mxu0 %v997
    %1306 = vmatpush1.bf16.msra.mxu0 %v996
    %1307 = vmatprep.subr.bf16.mxu0 %v1001
    %1308 = vmatpush1.bf16.msra.mxu0 %v1000
    %1309 = vmatprep.mubr.bf16.mxu0 %v335
    %1310 = vmatmul.mubr.bf16.gmra.mrb[0].mxu0 %v334
    %v1311 = vpop.f32.mrb[0].mxu0
    %v1312 = vadd.f32 %v1244, %v1311
    %v1313 = vpop.f32.mrb[0].mxu0
    %v1314 = vadd.f32 %v1248, %v1313
    %v1315 = vpop.f32.mrb[0].mxu0
    %v1316 = vpop.f32.mrb[0].mxu0
    %1317 = vdwg.mxu0
    %1318 = vmatprep.subr.bf16.mxu0 %v1005
    %1319 = vmatpush1.bf16.msra.mxu0 %v1004
    %1320 = vmatprep.subr.bf16.mxu0 %v1009
    %1321 = vmatpush1.bf16.msra.mxu0 %v1008
    %1322 = vmatprep.subr.bf16.mxu0 %v1013
    %1323 = vmatpush1.bf16.msra.mxu0 %v1012
    %1324 = vmatprep.subr.bf16.mxu0 %v1017
    %1325 = vmatpush1.bf16.msra.mxu0 %v1016
    %1326 = vmatprep.subr.bf16.mxu0 %v1021
    %1327 = vmatpush1.bf16.msra.mxu0 %v1020
    %1328 = vmatprep.subr.bf16.mxu0 %v1025
    %1329 = vmatpush1.bf16.msra.mxu0 %v1024
    %1330 = vmatprep.subr.bf16.mxu0 %v1029
    %1331 = vmatpush1.bf16.msra.mxu0 %v1028
    %1332 = vmatprep.subr.bf16.mxu0 %v1033
    %1333 = vmatpush1.bf16.msra.mxu0 %v1032
    %1334 = vmatprep.subr.bf16.mxu0 %v1037
    %1335 = vmatpush1.bf16.msra.mxu0 %v1036
    %1336 = vmatprep.subr.bf16.mxu0 %v1041
    %1337 = vmatpush1.bf16.msra.mxu0 %v1040
    %1338 = vmatprep.subr.bf16.mxu0 %v1045
    %1339 = vmatpush1.bf16.msra.mxu0 %v1044
    %1340 = vmatprep.subr.bf16.mxu0 %v1049
    %1341 = vmatpush1.bf16.msra.mxu0 %v1048
    %1342 = vmatprep.subr.bf16.mxu0 %v1053
    %1343 = vmatpush1.bf16.msra.mxu0 %v1052
    %1344 = vmatprep.subr.bf16.mxu0 %v1057
    %1345 = vmatpush1.bf16.msra.mxu0 %v1056
    %1346 = vmatprep.subr.bf16.mxu0 %v1061
    %1347 = vmatpush1.bf16.msra.mxu0 %v1060
    %1348 = vmatprep.subr.bf16.mxu0 %v1065
    %1349 = vmatpush1.bf16.msra.mxu0 %v1064
    %1350 = vmatprep.mubr.bf16.mxu0 %v337
    %1351 = vmatmul.mubr.bf16.gmra.mrb[0].mxu0 %v336
    %v1352 = vpop.f32.mrb[0].mxu0
    %v1353 = vadd.f32 %v1312, %v1352
    %v1354 = vpop.f32.mrb[0].mxu0
    %v1355 = vadd.f32 %v1314, %v1354
    %v1356 = vpop.f32.mrb[0].mxu0
    %v1357 = vpop.f32.mrb[0].mxu0
    %1358 = vdwg.mxu0
    %1359 = vmatprep.subr.bf16.mxu0 %v1069
    %1360 = vmatpush1.bf16.msra.mxu0 %v1068
    %1361 = vmatprep.subr.bf16.mxu0 %v1073
    %1362 = vmatpush1.bf16.msra.mxu0 %v1072
    %1363 = vmatprep.subr.bf16.mxu0 %v1077
    %1364 = vmatpush1.bf16.msra.mxu0 %v1076
    %1365 = vmatprep.subr.bf16.mxu0 %v1081
    %1366 = vmatpush1.bf16.msra.mxu0 %v1080
    %1367 = vmatprep.subr.bf16.mxu0 %v1085
    %1368 = vmatpush1.bf16.msra.mxu0 %v1084
    %1369 = vmatprep.subr.bf16.mxu0 %v1269
    %1370 = vmatpush1.bf16.msra.mxu0 %v1266
    %1371 = vmatprep.subr.bf16.mxu0 0
    %1372 = vmatpush1.bf16.msra.mxu0 0
    %1373 = vmatprep.subr.bf16.mxu0 0
    %1374 = vmatpush1.bf16.msra.mxu0 0
    %1375 = vmatprep.subr.bf16.mxu0 0
    %1376 = vmatpush1.bf16.msra.mxu0 0
    %1377 = vmatprep.subr.bf16.mxu0 0
    %1378 = vmatpush1.bf16.msra.mxu0 0
    %1379 = vmatprep.subr.bf16.mxu0 0
    %1380 = vmatpush1.bf16.msra.mxu0 0
    %1381 = vmatprep.subr.bf16.mxu0 0
    %1382 = vmatpush1.bf16.msra.mxu0 0
    %1383 = vmatprep.subr.bf16.mxu0 0
    %1384 = vmatpush1.bf16.msra.mxu0 0
    %1385 = vmatprep.subr.bf16.mxu0 0
    %1386 = vmatpush1.bf16.msra.mxu0 0
    %1387 = vmatprep.subr.bf16.mxu0 0
    %1388 = vmatpush1.bf16.msra.mxu0 0
    %1389 = vmatprep.subr.bf16.mxu0 0
    %1390 = vmatpush1.bf16.msra.mxu0 0
    %1391 = vmatprep.mubr.bf16.mxu0 0
    %1392 = vmatmul.mubr.bf16.gmra.mrb[0].mxu0 %v1263
    %v1393 = vpop.f32.mrb[0].mxu0
    %v1394 = vadd.f32 %v1353, %v1393
    %v1395 = vpop.f32.mrb[0].mxu0
    %v1396 = vadd.f32 %v1355, %v1395
    %v1397 = vpop.f32.mrb[0].mxu0
    %v1398 = vpop.f32.mrb[0].mxu0
    %1399 = vdwg.mxu0
    %1400 = vmatprep.subr.bf16.mxu0 %v943
    %1401 = vmatpush1.bf16.msra.mxu0 %v942
    %1402 = vmatprep.subr.bf16.mxu0 %v947
    %1403 = vmatpush1.bf16.msra.mxu0 %v946
    %1404 = vmatprep.subr.bf16.mxu0 %v951
    %1405 = vmatpush1.bf16.msra.mxu0 %v950
    %1406 = vmatprep.subr.bf16.mxu0 %v955
    %1407 = vmatpush1.bf16.msra.mxu0 %v954
    %1408 = vmatprep.subr.bf16.mxu0 %v959
    %1409 = vmatpush1.bf16.msra.mxu0 %v958
    %1410 = vmatprep.subr.bf16.mxu0 %v963
    %1411 = vmatpush1.bf16.msra.mxu0 %v962
    %1412 = vmatprep.subr.bf16.mxu0 %v967
    %1413 = vmatpush1.bf16.msra.mxu0 %v966
    %1414 = vmatprep.subr.bf16.mxu0 %v971
    %1415 = vmatpush1.bf16.msra.mxu0 %v970
    %1416 = vmatprep.subr.bf16.mxu0 %v975
    %1417 = vmatpush1.bf16.msra.mxu0 %v974
    %1418 = vmatprep.subr.bf16.mxu0 %v979
    %1419 = vmatpush1.bf16.msra.mxu0 %v978
    %1420 = vmatprep.subr.bf16.mxu0 %v983
    %1421 = vmatpush1.bf16.msra.mxu0 %v982
    %1422 = vmatprep.subr.bf16.mxu0 %v987
    %1423 = vmatpush1.bf16.msra.mxu0 %v986
    %1424 = vmatprep.subr.bf16.mxu0 %v991
    %1425 = vmatpush1.bf16.msra.mxu0 %v990
    %1426 = vmatprep.subr.bf16.mxu0 %v995
    %1427 = vmatpush1.bf16.msra.mxu0 %v994
    %1428 = vmatprep.subr.bf16.mxu0 %v999
    %1429 = vmatpush1.bf16.msra.mxu0 %v998
    %1430 = vmatprep.subr.bf16.mxu0 %v1003
    %1431 = vmatpush1.bf16.msra.mxu0 %v1002
    %1432 = vmatprep.mubr.bf16.mxu0 %v335
    %1433 = vmatmul.mubr.bf16.gmra.mrb[0].mxu0 %v334
    %v1434 = vpop.f32.mrb[0].mxu0
    %v1435 = vadd.f32 %v1252, %v1434
    %v1436 = vpop.f32.mrb[0].mxu0
    %v1437 = vadd.f32 %v1256, %v1436
    %v1438 = vpop.f32.mrb[0].mxu0
    %v1439 = vpop.f32.mrb[0].mxu0
    %1440 = vdwg.mxu0
    %1441 = vmatprep.subr.bf16.mxu0 %v1007
    %1442 = vmatpush1.bf16.msra.mxu0 %v1006
    %1443 = vmatprep.subr.bf16.mxu0 %v1011
    %1444 = vmatpush1.bf16.msra.mxu0 %v1010
    %1445 = vmatprep.subr.bf16.mxu0 %v1015
    %1446 = vmatpush1.bf16.msra.mxu0 %v1014
    %1447 = vmatprep.subr.bf16.mxu0 %v1019
    %1448 = vmatpush1.bf16.msra.mxu0 %v1018
    %1449 = vmatprep.subr.bf16.mxu0 %v1023
    %1450 = vmatpush1.bf16.msra.mxu0 %v1022
    %1451 = vmatprep.subr.bf16.mxu0 %v1027
    %1452 = vmatpush1.bf16.msra.mxu0 %v1026
    %1453 = vmatprep.subr.bf16.mxu0 %v1031
    %1454 = vmatpush1.bf16.msra.mxu0 %v1030
    %1455 = vmatprep.subr.bf16.mxu0 %v1035
    %1456 = vmatpush1.bf16.msra.mxu0 %v1034
    %1457 = vmatprep.subr.bf16.mxu0 %v1039
    %1458 = vmatpush1.bf16.msra.mxu0 %v1038
    %1459 = vmatprep.subr.bf16.mxu0 %v1043
    %1460 = vmatpush1.bf16.msra.mxu0 %v1042
    %1461 = vmatprep.subr.bf16.mxu0 %v1047
    %1462 = vmatpush1.bf16.msra.mxu0 %v1046
    %1463 = vmatprep.subr.bf16.mxu0 %v1051
    %1464 = vmatpush1.bf16.msra.mxu0 %v1050
    %1465 = vmatprep.subr.bf16.mxu0 %v1055
    %1466 = vmatpush1.bf16.msra.mxu0 %v1054
    %1467 = vmatprep.subr.bf16.mxu0 %v1059
    %1468 = vmatpush1.bf16.msra.mxu0 %v1058
    %1469 = vmatprep.subr.bf16.mxu0 %v1063
    %1470 = vmatpush1.bf16.msra.mxu0 %v1062
    %1471 = vmatprep.subr.bf16.mxu0 %v1067
    %1472 = vmatpush1.bf16.msra.mxu0 %v1066
    %1473 = vmatprep.mubr.bf16.mxu0 %v337
    %1474 = vmatmul.mubr.bf16.gmra.mrb[0].mxu0 %v336
    %v1475 = vpop.f32.mrb[0].mxu0
    %v1476 = vadd.f32 %v1435, %v1475
    %v1477 = vpop.f32.mrb[0].mxu0
    %v1478 = vadd.f32 %v1437, %v1477
    %v1479 = vpop.f32.mrb[0].mxu0
    %v1480 = vpop.f32.mrb[0].mxu0
    %1481 = vdwg.mxu0
    %1482 = vmatprep.subr.bf16.mxu0 %v1071
    %1483 = vmatpush1.bf16.msra.mxu0 %v1070
    %1484 = vmatprep.subr.bf16.mxu0 %v1075
    %1485 = vmatpush1.bf16.msra.mxu0 %v1074
    %1486 = vmatprep.subr.bf16.mxu0 %v1079
    %1487 = vmatpush1.bf16.msra.mxu0 %v1078
    %1488 = vmatprep.subr.bf16.mxu0 %v1083
    %1489 = vmatpush1.bf16.msra.mxu0 %v1082
    %1490 = vmatprep.subr.bf16.mxu0 %v1087
    %1491 = vmatpush1.bf16.msra.mxu0 %v1086
    %1492 = vmatprep.subr.bf16.mxu0 %v1275
    %1493 = vmatpush1.bf16.msra.mxu0 %v1272
    %1494 = vmatprep.subr.bf16.mxu0 0
    %1495 = vmatpush1.bf16.msra.mxu0 0
    %1496 = vmatprep.subr.bf16.mxu0 0
    %1497 = vmatpush1.bf16.msra.mxu0 0
    %1498 = vmatprep.subr.bf16.mxu0 0
    %1499 = vmatpush1.bf16.msra.mxu0 0
    %1500 = vmatprep.subr.bf16.mxu0 0
    %1501 = vmatpush1.bf16.msra.mxu0 0
    %1502 = vmatprep.subr.bf16.mxu0 0
    %1503 = vmatpush1.bf16.msra.mxu0 0
    %1504 = vmatprep.subr.bf16.mxu0 0
    %1505 = vmatpush1.bf16.msra.mxu0 0
    %1506 = vmatprep.subr.bf16.mxu0 0
    %1507 = vmatpush1.bf16.msra.mxu0 0
    %1508 = vmatprep.subr.bf16.mxu0 0
    %1509 = vmatpush1.bf16.msra.mxu0 0
    %1510 = vmatprep.subr.bf16.mxu0 0
    %1511 = vmatpush1.bf16.msra.mxu0 0
    %1512 = vmatprep.subr.bf16.mxu0 0
    %1513 = vmatpush1.bf16.msra.mxu0 0
    %1514 = vmatprep.mubr.bf16.mxu0 0
    %1515 = vmatmul.mubr.bf16.gmra.mrb[0].mxu0 %v1263
    %v1516 = vpop.f32.mrb[0].mxu0
    %v1517 = vadd.f32 %v1476, %v1516
    %v1518 = vpop.f32.mrb[0].mxu0
    %v1519 = vadd.f32 %v1478, %v1518
    %v1520 = vpop.f32.mrb[0].mxu0
    %v1521 = vpop.f32.mrb[0].mxu0
    %1522 = vdwg.mxu0
    %vm1523 = vcmp.gt.f32.partialorder %v1394, 0.0
    %vm1524 = vcmp.gt.f32.partialorder %v1396, 0.0
    %vm1525 = vcmp.gt.f32.partialorder %v1517, 0.0
    %vm1526 = vcmp.gt.f32.partialorder %v1519, 0.0
    %v1527 = vmul.f32 %v1394, 0.02
    %v1528 = vmul.f32 %v1396, 0.02
    %v1529 = vmul.f32 %v1517, 0.02
    %v1530 = vmul.f32 %v1519, 0.02
    %v1531 = vsel %vm1523, %v1394, %v1527
    %v1532 = vsel %vm1524, %v1396, %v1528
    %v1533 = vsel %vm1525, %v1517, %v1529
    %v1534 = vsel %vm1526, %v1519, %v1530
    %vm1535 = vcmask 1040384
    %v1536 = vsel %vm1535, %v1531, 0.0
    %v1537 = vsel %vm1535, %v1532, 0.0
    %v1538 = vadd.f32 %v1536, %v1537
    %v1539 = vsel %vm1535, %v1533, 0.0
    %v1540 = vadd.f32 %v1538, %v1539
    %vm1541 = vcmask 122880
    %v1542 = vsel %vm1541, %v1534, 0.0
    %v1543 = vadd.f32 %v1540, %v1542
    %1544 = vadd.xlane.f32.xlu0 %v1543
    %v1545 = vpop.xlane.xlu0 %1544
    %v1546 = vrcp.pop 400.0
    %v1547 = vmul.f32 %v1545, %v1546
    %v1548 = vsub.f32 %v1531, %v1547
    %v1549 = vsub.f32 %v1532, %v1547
    %v1550 = vsub.f32 %v1533, %v1547
    %v1551 = vsub.f32 %v1534, %v1547
    %v1552 = vmul.f32 %v1548, %v1548
    %v1553 = vmul.f32 %v1549, %v1549
    %v1554 = vmul.f32 %v1550, %v1550
    %v1555 = vmul.f32 %v1551, %v1551
    %v1556 = vsel %vm1535, %v1552, 0.0
    %v1557 = vsel %vm1535, %v1553, 0.0
    %v1558 = vadd.f32 %v1556, %v1557
    %v1559 = vsel %vm1535, %v1554, 0.0
    %v1560 = vadd.f32 %v1558, %v1559
    %v1561 = vsel %vm1541, %v1555, 0.0
    %v1562 = vadd.f32 %v1560, %v1561
    %1563 = vadd.xlane.f32.xlu0 %v1562
    %v1564 = vpop.xlane.xlu0 %1563
    %v1565 = vmul.f32 %v1564, %v1546
    %v1566 = vadd.f32 %v1565, 1e-05
    %v1567 = vrsqrt.pop %v1566
    %v1568 = vmul.f32 %v1548, %v1567
    %v1569 = vmul.f32 %v1549, %v1567
    %v1570 = vmul.f32 %v1550, %v1567
    %v1571 = vmul.f32 %v1551, %v1567
    %v1572 = vld [vmem:[%s7] sm:$0xf]
    %v1574 = vlaneseq
    %v1575 = vshrl.u32 %v1574, 7
    %v1576 = vsub.s32 0, %v1575
    %v1577 = vrot.slane %v1572, %v1576
    %v1578 = vlaneseq
    %v1579 = vshrl.u32 %v1578, 7
    %v1580 = vsub.s32 1, %v1579
    %v1581 = vrot.slane %v1572, %v1580
    %v1582 = vlaneseq
    %v1583 = vshrl.u32 %v1582, 7
    %v1584 = vsub.s32 2, %v1583
    %v1585 = vrot.slane %v1572, %v1584
    %v1586 = vlaneseq
    %v1587 = vshrl.u32 %v1586, 7
    %v1588 = vsub.s32 3, %v1587
    %v1589 = vrot.slane %v1572, %v1588
    %v1594 = vmul.f32 %v1568, %v1577
    %v1595 = vmul.f32 %v1569, %v1581
    %v1596 = vmul.f32 %v1570, %v1585
    %v1597 = vmul.f32 %v1571, %v1589
    %v1598 = vld [vmem:[%s8] sm:$0xf]
    %v1600 = vlaneseq
    %v1601 = vshrl.u32 %v1600, 7
    %v1602 = vsub.s32 0, %v1601
    %v1603 = vrot.slane %v1598, %v1602
    %v1604 = vlaneseq
    %v1605 = vshrl.u32 %v1604, 7
    %v1606 = vsub.s32 1, %v1605
    %v1607 = vrot.slane %v1598, %v1606
    %v1608 = vlaneseq
    %v1609 = vshrl.u32 %v1608, 7
    %v1610 = vsub.s32 2, %v1609
    %v1611 = vrot.slane %v1598, %v1610
    %v1612 = vlaneseq
    %v1613 = vshrl.u32 %v1612, 7
    %v1614 = vsub.s32 3, %v1613
    %v1615 = vrot.slane %v1598, %v1614
    %v1620 = vadd.f32 %v1594, %v1603
    %v1621 = vadd.f32 %v1595, %v1607
    %v1622 = vadd.f32 %v1596, %v1611
    %v1623 = vadd.f32 %v1597, %v1615
    %v1624 = vld [vmem:[%s9] sm:$0xf]
    %v1626 = vlaneseq
    %v1627 = vshrl.u32 %v1626, 7
    %v1628 = vsub.s32 0, %v1627
    %v1629 = vrot.slane %v1624, %v1628
    %v1630 = vlaneseq
    %v1631 = vshrl.u32 %v1630, 7
    %v1632 = vsub.s32 1, %v1631
    %v1633 = vrot.slane %v1624, %v1632
    %v1634 = vlaneseq
    %v1635 = vshrl.u32 %v1634, 7
    %v1636 = vsub.s32 2, %v1635
    %v1637 = vrot.slane %v1624, %v1636
    %v1638 = vlaneseq
    %v1639 = vshrl.u32 %v1638, 7
    %v1640 = vsub.s32 3, %v1639
    %v1641 = vrot.slane %v1624, %v1640
    %v1646 = vmul.f32 %v1620, %v1629
    %v1647 = vmul.f32 %v1621, %v1633
    %v1648 = vmul.f32 %v1622, %v1637
    %v1649 = vmul.f32 %v1623, %v1641
    %v1650 = vsel %vm1535, %v1646, 0.0
    %v1651 = vsel %vm1535, %v1647, 0.0
    %v1652 = vadd.f32 %v1650, %v1651
    %v1653 = vsel %vm1535, %v1648, 0.0
    %v1654 = vadd.f32 %v1652, %v1653
    %v1655 = vsel %vm1541, %v1649, 0.0
    %v1656 = vadd.f32 %v1654, %v1655
    %1657 = vadd.xlane.f32.xlu0 %v1656
    %v1658 = vpop.xlane.xlu0 %1657
    %v1659 = vld [vmem:[#allocation2] sm:$0x1]
    %v1660 = vadd.f32 %v1658, %v1659
    %v1661 = vsub.f32 0.0, %v1660
    %v1662 = vmul.f32 %v1661, 1.442695
    %v1663 = vpow.pop %v1662
    %v1664 = vadd.f32 %v1663, 1.0
    %v1665 = vrcp.pop %v1664
    %vm1666 = vcmask 0
    %1667 = vst.msk [vmem:[#allocation6] sm:$0x1] %vm1666, %v1665
    // Predicated region
    $region50: #{_hobbit_forward_impl.1} parent=1 // pred_check
      _
    $region51: #{_hobbit_forward_impl.1} parent=1 // pred_check_branch
      %1669 = sbr.rel (0) target = $region53
    $region52: #{_hobbit_forward_impl.1} parent=1 // pred_region
      %s1671 = ssub.s32 16, 16
      %1672 = vsyncadd [#allocation4], %s1671
      %s1674 = sshll.u32 [#allocation6], 4
      %s1675 = int_to_ptr.vmem [resolvable:$true] %s1674
      %1677 = dma.vmem_to_hbm [thread:$0]  %s1675, 16, %s11, [#allocation4]
    $region53: #{_hobbit_forward_impl.1} parent=1 // pred_fallthru
      _
    // Predicated region
    $region54: #{_hobbit_forward_impl.1} parent=1 // pred_check
      _
    $region55: #{_hobbit_forward_impl.1} parent=1 // pred_check_branch
      %1679 = sbr.rel (0) target = $region57
    $region56: #{_hobbit_forward_impl.1} parent=1 // pred_region
      %1680 = dma.done [#allocation4], 16
    $region57: #{_hobbit_forward_impl.1} parent=1 // pred_fallthru
      _
    %1681 = vsyncpa [#allocation4], 1
    %1682 = vsyncpa [#allocation5], 1

</llo_original>
